<compile_context>
chip_gen: v5e
topology: v5e:2x2
jax: 0.10.0
libtpu: 0.0.40
codegen_flags: <defaults>
</compile_context>

<pallas_src>
import math
import functools

import jax
import jax.numpy as jnp
from jax import lax
from jax.experimental import pallas as pl
from jax.experimental.pallas import tpu as pltpu


def _make_pe(n_features: int, max_len: int = 100) -> jnp.ndarray:
    """Sinusoidal positional encoding table, shape (max_len, n_features)."""
    position = jnp.arange(max_len, dtype=jnp.float32)[:, None]
    div_term = jnp.exp(
        jnp.arange(0, n_features, 2, dtype=jnp.float32)
        * (-math.log(10000.0) / n_features)
    )
    pe = jnp.zeros((max_len, n_features), jnp.float32)
    pe = pe.at[:, 0::2].set(jnp.sin(position * div_term))
    pe = pe.at[:, 1::2].set(jnp.cos(position * div_term))
    return pe


def _fused_transformer_kernel(x_ref, pe_ref, wqkv_ref, bqkv_ref,
                              wd_ref, bd_ref, wf_ref, bf_ref,
                              bn1_ref, bn2_ref, grp_ref,
                              out_ref, attn_ref,
                              *, B, S, H, F):
    # x_ref   : (M, HF)   embedding slab, M = B*S rows, HF = H*F head-major cols
    # pe_ref  : (M, HF)   positional encoding tiled to the same slab layout
    # wqkv_ref: (HF, 3HF) bf16 block-diagonal fused Q|K|V weights (q pre-scaled)
    # bqkv_ref: (1, 3HF)  fused biases
    # wd_ref  : (HF, HF)  bf16 block-diagonal replica of the shared dense layer
    # bd_ref  : (1, HF)   dense bias tiled per head
    # wf_ref  : (HF, Vp)  bf16 final projection (vocab zero-padded to Vp)
    # bf_ref  : (1, Vp)
    # bn1_ref, bn2_ref : (2, HF) rows = [gamma, beta], repeated per head
    # grp_ref : (HF, HF)  f32 head-group matrix (1 where same head) — one matmul
    #                     against it yields per-head sums broadcast back to lanes
    # out_ref : (M, Vp)   lane-dense logits slab
    # attn_ref: (M, HF)   VMEM scratch for the per-head attention outputs
    M, HF = x_ref.shape
    eps = 1e-5
    inv_n = 1.0 / float(M * F)          # BatchNorm2d count per channel: B*S*F

    # ---- embeddings + positional encoding (single add over the slab) --------
    x = x_ref[...] + pe_ref[...]                                   # (M, HF) f32

    # ---- fused per-head QKV projection: one (M,128)x(128,384) bf16 matmul ---
    qkv = jnp.dot(x.astype(jnp.bfloat16), wqkv_ref[...],
                  preferred_element_type=jnp.float32) + bqkv_ref[...]
    q = qkv[:, 0 * HF:1 * HF]        # 1/sqrt(F) already folded into wq/bq
    k = qkv[:, 1 * HF:2 * HF]
    v = qkv[:, 2 * HF:3 * HF]

    # ---- causal attention (inherently tiny per-(batch,head) S x S scores) ---
    rr = lax.broadcasted_iota(jnp.int32, (S, S), 0)
    cc = lax.broadcasted_iota(jnp.int32, (S, S), 1)
    neg = jnp.where(cc > rr, -1e30, 0.0).astype(jnp.float32)   # additive mask

    for h in range(H):
        cols = slice(h * F, (h + 1) * F)
        qh = q[:, cols].reshape(B, S, F)
        kh = k[:, cols].reshape(B, S, F)
        vh = v[:, cols].reshape(B, S, F)
        s = jnp.einsum('bqf,bkf->bqk', qh, kh,
                       preferred_element_type=jnp.float32) + neg[None]
        m = jnp.max(s, axis=-1, keepdims=True)
        p = jnp.exp(s - m)
        p = p * pl.reciprocal(jnp.sum(p, axis=-1, keepdims=True), approx=True)
        ah = jnp.einsum('bqk,bkf->bqf', p, vh,
                        preferred_element_type=jnp.float32)
        attn_ref[:, cols] = ah.reshape(M, F)

    # ---- BatchNorm2d: single-pass batch statistics for all heads at once ----
    def batch_norm(t, bn):
        st = jnp.concatenate(
            [jnp.sum(t, axis=0, keepdims=True),
             jnp.sum(t * t, axis=0, keepdims=True)], axis=0)       # (2, HF)
        gs = jnp.dot(st, grp_ref[...],
                     preferred_element_type=jnp.float32)           # per-head sums
        mean = gs[0:1] * inv_n
        var = gs[1:2] * inv_n - mean * mean
        scale = bn[0:1] * lax.rsqrt(var + eps)
        shift = bn[1:2] - mean * scale
        return t * scale + shift

    # residual + BN #1
    y = batch_norm(attn_ref[...] + x, bn1_ref[...])

    # shared dense (block-diag replica, one (16,128)x(128,128) bf16 matmul)
    z = jnp.dot(y.astype(jnp.bfloat16), wd_ref[...],
                preferred_element_type=jnp.float32) + bd_ref[...]
    z = jnp.maximum(z, 0.0) + y
    z = batch_norm(z, bn2_ref[...])

    # ---- final head-concat projection to lane-dense padded logits -----------
    out_ref[...] = jnp.dot(z.astype(jnp.bfloat16), wf_ref[...],
                           preferred_element_type=jnp.float32) + bf_ref[...]


def _block_diag_per_head(w):
    """(H, F, F) per-head weights -> (H*F, H*F) block-diagonal matrix."""
    H, F, _ = w.shape
    eye = jnp.eye(H, dtype=w.dtype)
    return jnp.einsum('hij,hg->higj', w, eye).reshape(H * F, H * F)


@jax.jit
def model_forward(seq, params):
    """seq: (B, S) int32 token ids.  Returns (B, S, n_vocab) float32 logits."""
    emb = params['emb']                                   # (H, Vocab, F)
    H, _, F = emb.shape
    B, S = seq.shape
    HF, M = H * F, B * S
    V = params['bf'].shape[-1]
    V_pad = ((V + 127) // 128) * 128                      # lane-dense output
    assert S <= 100, "positional-encoding table has max_len=100"

    # Embedding gather (glue) -> lane-dense (B*S, H*F) slab, head-major columns
    # (matches PyTorch's transpose(1,2).reshape concat order).
    x_slab = jnp.transpose(emb[:, seq, :], (1, 2, 0, 3)).reshape(M, HF)
    x_slab = x_slab.astype(jnp.float32)
    pe_slab = jnp.tile(_make_pe(F, 100)[:S], (B, H))      # (M, HF)

    # Fused Q|K|V block-diagonal weight; fold attention scale into q.
    inv_sqrt_f = 1.0 / math.sqrt(F)
    wqkv = jnp.concatenate(
        [_block_diag_per_head(params['wq'] * inv_sqrt_f),
         _block_diag_per_head(params['wk']),
         _block_diag_per_head(params['wv'])], axis=1).astype(jnp.bfloat16)
    bqkv = jnp.concatenate(
        [(params['bq'] * inv_sqrt_f).reshape(1, HF),
         params['bk'].reshape(1, HF),
         params['bv'].reshape(1, HF)], axis=1)

    # Shared dense layer replicated block-diagonally across heads.
    eye_h = jnp.eye(H, dtype=jnp.float32)
    wd_blk = jnp.einsum('ij,hg->higj', params['wd'],
                        eye_h).reshape(HF, HF).astype(jnp.bfloat16)
    bd_row = jnp.tile(params['bd'], (1, H))               # (1, HF)

    # Final projection padded to a multiple of 128 lanes.
    wf_pad = jnp.pad(params['wf'].reshape(HF, V),
                     ((0, 0), (0, V_pad - V))).astype(jnp.bfloat16)
    bf_pad = jnp.pad(params['bf'], ((0, 0), (0, V_pad - V)))

    # BatchNorm affine params broadcast per-head along the lane dimension.
    bn1 = jnp.stack([jnp.repeat(params['g1'], F),
                     jnp.repeat(params['be1'], F)], axis=0)   # (2, HF)
    bn2 = jnp.stack([jnp.repeat(params['g2'], F),
                     jnp.repeat(params['be2'], F)], axis=0)

    # Head-group matrix: (1,HF) @ grp sums each head's F lanes and broadcasts.
    ids = jnp.arange(HF, dtype=jnp.int32) // F
    grp = (ids[:, None] == ids[None, :]).astype(jnp.float32)  # (HF, HF)

    vmem = pl.BlockSpec(memory_space=pltpu.MemorySpace.VMEM)
    out = pl.pallas_call(
        functools.partial(_fused_transformer_kernel, B=B, S=S, H=H, F=F),
        out_shape=jax.ShapeDtypeStruct((M, V_pad), jnp.float32),
        in_specs=[vmem] * 11,
        out_specs=vmem,
        scratch_shapes=[pltpu.VMEM((M, HF), jnp.float32)],
    )(x_slab, pe_slab, wqkv, bqkv, wd_blk, bd_row, wf_pad, bf_pad,
      bn1, bn2, grp)

    return out.reshape(B, S, V_pad)[:, :, :V]


def init_params(key, n_vocab, n_heads, n_features):
    F = n_features
    ks = jax.random.split(key, 16)

    def lin(k, shape, fan_in):
        bound = 1.0 / math.sqrt(fan_in)
        return jax.random.uniform(k, shape, jnp.float32, -bound, bound)

    return dict(
        emb=jax.random.normal(ks[0], (n_heads, n_vocab, F), jnp.float32),
        wq=lin(ks[1], (n_heads, F, F), F), bq=lin(ks[2], (n_heads, F), F),
        wk=lin(ks[3], (n_heads, F, F), F), bk=lin(ks[4], (n_heads, F), F),
        wv=lin(ks[5], (n_heads, F, F), F), bv=lin(ks[6], (n_heads, F), F),
        wd=lin(ks[7], (F, F), F),          bd=lin(ks[8], (1, F), F),
        wf=lin(ks[9], (n_heads, F, n_vocab), n_heads * F),
        bf=lin(ks[10], (1, n_vocab), n_heads * F),
        g1=1.0 + 0.1 * jax.random.normal(ks[11], (n_heads,), jnp.float32),
        be1=0.1 * jax.random.normal(ks[12], (n_heads,), jnp.float32),
        g2=1.0 + 0.1 * jax.random.normal(ks[13], (n_heads,), jnp.float32),
        be2=0.1 * jax.random.normal(ks[14], (n_heads,), jnp.float32),
    )


def reference_forward(seq, params):
    """Pure-JAX (f32) reference mirroring the PyTorch forward."""
    emb = params['emb']
    H, _, F = emb.shape
    B, S = seq.shape
    eps = 1e-5

    x = jnp.transpose(emb[:, seq, :], (1, 0, 2, 3)) + _make_pe(F, 100)[None, None, :S]

    q = jnp.einsum('bhsf,hfg->bhsg', x, params['wq']) + params['bq'][None, :, None, :]
    k = jnp.einsum('bhsf,hfg->bhsg', x, params['wk']) + params['bk'][None, :, None, :]
    v = jnp.einsum('bhsf,hfg->bhsg', x, params['wv']) + params['bv'][None, :, None, :]
    w = jnp.einsum('bhqf,bhkf->bhqk', q, k)
    mask = jnp.triu(jnp.ones((S, S), bool), 1)
    w = jnp.where(mask[None, None], -jnp.inf, w) / math.sqrt(F)
    w = jax.nn.softmax(w, axis=-1)
    a = jnp.einsum('bhqk,bhkf->bhqf', w, v)
    y = a + x

    def bn(t, g, b):
        mu = t.mean(axis=(0, 2, 3), keepdims=True)
        var = t.var(axis=(0, 2, 3), keepdims=True)
        return (t - mu) / jnp.sqrt(var + eps) * g.reshape(1, -1, 1, 1) + b.reshape(1, -1, 1, 1)

    y = bn(y, params['g1'], params['be1'])
    z = jnp.maximum(jnp.einsum('bhsf,fg->bhsg', y, params['wd']) + params['bd'][0], 0.0) + y
    z = bn(z, params['g2'], params['be2'])
    zz = jnp.transpose(z, (0, 2, 1, 3)).reshape(B, S, H * F)
    return zz @ params['wf'].reshape(H * F, -1) + params['bf']


if __name__ == "__main__":
    n_vocab, n_heads, n_features = 64, 4, 32
    B, S = 2, 8

    key = jax.random.PRNGKey(0)
    kp, kseq = jax.random.split(key)
    params = init_params(kp, n_vocab, n_heads, n_features)
    seq = jax.random.randint(kseq, (B, S), 0, n_vocab, dtype=jnp.int32)

    out = model_forward(seq, params)
    out = jax.block_until_ready(out)

    ref = reference_forward(seq, params)
    assert out.shape == (B, S, n_vocab), out.shape
    max_err = float(jnp.max(jnp.abs(out - ref)))
    # Tolerance accounts for bf16 MXU inputs + approx EUP reciprocal vs the
    # pure-f32 reference; structural errors would be O(0.1 - 1).
    assert jnp.allclose(out, ref, atol=5e-2, rtol=5e-2), f"max_err={max_err}"

    print("KERNEL_OK")
</pallas_src>

<mosaic_0001>
module attributes {stable_mosaic.version = 11 : i64} {
  func.func @_fused_transformer_kernel(%arg0: memref<16x128xf32, #tpu.memory_space<vmem>>, %arg1: memref<16x128xf32, #tpu.memory_space<vmem>>, %arg2: memref<128x384xbf16, #tpu.memory_space<vmem>>, %arg3: memref<1x384xf32, #tpu.memory_space<vmem>>, %arg4: memref<128x128xbf16, #tpu.memory_space<vmem>>, %arg5: memref<1x128xf32, #tpu.memory_space<vmem>>, %arg6: memref<128x128xbf16, #tpu.memory_space<vmem>>, %arg7: memref<1x128xf32, #tpu.memory_space<vmem>>, %arg8: memref<2x128xf32, #tpu.memory_space<vmem>>, %arg9: memref<2x128xf32, #tpu.memory_space<vmem>>, %arg10: memref<128x128xf32, #tpu.memory_space<vmem>>, %arg11: memref<16x128xf32, #tpu.memory_space<vmem>>, %arg12: memref<16x128xf32, #tpu.memory_space<vmem>>) attributes {dimension_semantics = [], scalar_prefetch = 0 : i64, scratch_operands = 1 : i64, tpu.core_type = #tpu.core_type<tc>} {
    %c0 = arith.constant 0 : index
    %c0_0 = arith.constant 0 : index
    %0 = vector.load %arg0[%c0, %c0_0] : memref<16x128xf32, #tpu.memory_space<vmem>>, vector<16x128xf32>
    %c0_1 = arith.constant 0 : index
    %c0_2 = arith.constant 0 : index
    %1 = vector.load %arg1[%c0_1, %c0_2] : memref<16x128xf32, #tpu.memory_space<vmem>>, vector<16x128xf32>
    %2 = arith.addf %0, %1 : vector<16x128xf32>
    %3 = arith.truncf %2 : vector<16x128xf32> to vector<16x128xbf16>
    %c0_3 = arith.constant 0 : index
    %c0_4 = arith.constant 0 : index
    %4 = vector.load %arg2[%c0_3, %c0_4] : memref<128x384xbf16, #tpu.memory_space<vmem>>, vector<128x384xbf16>
    %cst = arith.constant dense<0.000000e+00> : vector<16x384xf32>
    %5 = tpu.matmul %3, %4, %cst {dimension_numbers = #tpu.dot_dimension_numbers<[1], [0], [0], [1], [0, 0, 1, 1], [], []>} : vector<16x128xbf16>, vector<128x384xbf16>, vector<16x384xf32> -> vector<16x384xf32>
    %c0_5 = arith.constant 0 : index
    %c0_6 = arith.constant 0 : index
    %6 = vector.load %arg3[%c0_5, %c0_6] : memref<1x384xf32, #tpu.memory_space<vmem>>, vector<1x384xf32>
    %7 = vector.broadcast %6 : vector<1x384xf32> to vector<16x384xf32>
    %8 = arith.addf %5, %7 : vector<16x384xf32>
    %9 = vector.extract_strided_slice %8 {offsets = [0, 0], sizes = [16, 128], strides = [1, 1]} : vector<16x384xf32> to vector<16x128xf32>
    %10 = vector.extract_strided_slice %8 {offsets = [0, 128], sizes = [16, 128], strides = [1, 1]} : vector<16x384xf32> to vector<16x128xf32>
    %11 = vector.extract_strided_slice %8 {offsets = [0, 256], sizes = [16, 128], strides = [1, 1]} : vector<16x384xf32> to vector<16x128xf32>
    %12 = tpu.iota {dimensions = array<i32: 0>} : vector<8x8xi32>
    %13 = tpu.iota {dimensions = array<i32: 1>} : vector<8x8xi32>
    %14 = arith.cmpi sgt, %13, %12 : vector<8x8xi32>
    %cst_7 = arith.constant -1.000000e+30 : f32
    %cst_8 = arith.constant 0.000000e+00 : f32
    %15 = vector.broadcast %cst_7 : f32 to vector<8x8xf32>
    %16 = vector.broadcast %cst_8 : f32 to vector<8x8xf32>
    %17 = arith.select %14, %15, %16 : vector<8x8xi1>, vector<8x8xf32>
    %18 = vector.extract_strided_slice %9 {offsets = [0, 0], sizes = [16, 32], strides = [1, 1]} : vector<16x128xf32> to vector<16x32xf32>
    %19 = vector.shape_cast %18 : vector<16x32xf32> to vector<2x8x32xf32>
    %20 = vector.extract_strided_slice %10 {offsets = [0, 0], sizes = [16, 32], strides = [1, 1]} : vector<16x128xf32> to vector<16x32xf32>
    %21 = vector.shape_cast %20 : vector<16x32xf32> to vector<2x8x32xf32>
    %22 = vector.extract_strided_slice %11 {offsets = [0, 0], sizes = [16, 32], strides = [1, 1]} : vector<16x128xf32> to vector<16x32xf32>
    %23 = vector.shape_cast %22 : vector<16x32xf32> to vector<2x8x32xf32>
    "tpu.trace_start"() <{level = 10 : i32, message = "bqf,bkf->bqk"}> : () -> ()
    %cst_9 = arith.constant dense<0.000000e+00> : vector<2x8x8xf32>
    %24 = tpu.matmul %19, %21, %cst_9 {dimension_numbers = #tpu.dot_dimension_numbers<[2], [2], [1], [1], [0, 0, 0, 1, 1, 1], [0], [0]>} : vector<2x8x32xf32>, vector<2x8x32xf32>, vector<2x8x8xf32> -> vector<2x8x8xf32>
    "tpu.trace_stop"() : () -> ()
    %25 = vector.shape_cast %17 : vector<8x8xf32> to vector<1x8x8xf32>
    %26 = vector.broadcast %25 : vector<1x8x8xf32> to vector<2x8x8xf32>
    %27 = arith.addf %24, %26 : vector<2x8x8xf32>
    %cst_10 = arith.constant dense<0xFF800000> : vector<2x8xf32>
    %28 = vector.multi_reduction <maximumf>, %27, %cst_10 [2] : vector<2x8x8xf32> to vector<2x8xf32>
    %29 = vector.shape_cast %28 : vector<2x8xf32> to vector<2x8x1xf32>
    %30 = vector.broadcast %29 : vector<2x8x1xf32> to vector<2x8x8xf32>
    %31 = arith.subf %27, %30 : vector<2x8x8xf32>
    %32 = math.exp %31 : vector<2x8x8xf32>
    %cst_11 = arith.constant dense<0.000000e+00> : vector<2x8xf32>
    %33 = vector.multi_reduction <add>, %32, %cst_11 [2] : vector<2x8x8xf32> to vector<2x8xf32>
    %34 = vector.shape_cast %33 : vector<2x8xf32> to vector<2x8x1xf32>
    %35 = tpu.reciprocal %34 {approx = true} : vector<2x8x1xf32> -> vector<2x8x1xf32>
    %36 = vector.broadcast %35 : vector<2x8x1xf32> to vector<2x8x8xf32>
    %37 = arith.mulf %32, %36 : vector<2x8x8xf32>
    "tpu.trace_start"() <{level = 10 : i32, message = "bqk,bkf->bqf"}> : () -> ()
    %cst_12 = arith.constant dense<0.000000e+00> : vector<2x8x32xf32>
    %38 = tpu.matmul %37, %23, %cst_12 {dimension_numbers = #tpu.dot_dimension_numbers<[2], [1], [1], [2], [0, 0, 0, 1, 1, 2], [0], [0]>} : vector<2x8x8xf32>, vector<2x8x32xf32>, vector<2x8x32xf32> -> vector<2x8x32xf32>
    "tpu.trace_stop"() : () -> ()
    %39 = vector.shape_cast %38 : vector<2x8x32xf32> to vector<16x32xf32>
    %c0_13 = arith.constant 0 : index
    %c0_14 = arith.constant 0 : index
    %40 = vector.load %arg12[%c0_13, %c0_14] : memref<16x128xf32, #tpu.memory_space<vmem>>, vector<16x32xf32>
    tpu.vector_store %arg12[%c0_13, %c0_14], %39 {strides = array<i32>} : memref<16x128xf32, #tpu.memory_space<vmem>>, vector<16x32xf32>,
    %41 = vector.extract_strided_slice %9 {offsets = [0, 32], sizes = [16, 32], strides = [1, 1]} : vector<16x128xf32> to vector<16x32xf32>
    %42 = vector.shape_cast %41 : vector<16x32xf32> to vector<2x8x32xf32>
    %43 = vector.extract_strided_slice %10 {offsets = [0, 32], sizes = [16, 32], strides = [1, 1]} : vector<16x128xf32> to vector<16x32xf32>
    %44 = vector.shape_cast %43 : vector<16x32xf32> to vector<2x8x32xf32>
    %45 = vector.extract_strided_slice %11 {offsets = [0, 32], sizes = [16, 32], strides = [1, 1]} : vector<16x128xf32> to vector<16x32xf32>
    %46 = vector.shape_cast %45 : vector<16x32xf32> to vector<2x8x32xf32>
    "tpu.trace_start"() <{level = 10 : i32, message = "bqf,bkf->bqk"}> : () -> ()
    %cst_15 = arith.constant dense<0.000000e+00> : vector<2x8x8xf32>
    %47 = tpu.matmul %42, %44, %cst_15 {dimension_numbers = #tpu.dot_dimension_numbers<[2], [2], [1], [1], [0, 0, 0, 1, 1, 1], [0], [0]>} : vector<2x8x32xf32>, vector<2x8x32xf32>, vector<2x8x8xf32> -> vector<2x8x8xf32>
    "tpu.trace_stop"() : () -> ()
    %48 = vector.shape_cast %17 : vector<8x8xf32> to vector<1x8x8xf32>
    %49 = vector.broadcast %48 : vector<1x8x8xf32> to vector<2x8x8xf32>
    %50 = arith.addf %47, %49 : vector<2x8x8xf32>
    %cst_16 = arith.constant dense<0xFF800000> : vector<2x8xf32>
    %51 = vector.multi_reduction <maximumf>, %50, %cst_16 [2] : vector<2x8x8xf32> to vector<2x8xf32>
    %52 = vector.shape_cast %51 : vector<2x8xf32> to vector<2x8x1xf32>
    %53 = vector.broadcast %52 : vector<2x8x1xf32> to vector<2x8x8xf32>
    %54 = arith.subf %50, %53 : vector<2x8x8xf32>
    %55 = math.exp %54 : vector<2x8x8xf32>
    %cst_17 = arith.constant dense<0.000000e+00> : vector<2x8xf32>
    %56 = vector.multi_reduction <add>, %55, %cst_17 [2] : vector<2x8x8xf32> to vector<2x8xf32>
    %57 = vector.shape_cast %56 : vector<2x8xf32> to vector<2x8x1xf32>
    %58 = tpu.reciprocal %57 {approx = true} : vector<2x8x1xf32> -> vector<2x8x1xf32>
    %59 = vector.broadcast %58 : vector<2x8x1xf32> to vector<2x8x8xf32>
    %60 = arith.mulf %55, %59 : vector<2x8x8xf32>
    "tpu.trace_start"() <{level = 10 : i32, message = "bqk,bkf->bqf"}> : () -> ()
    %cst_18 = arith.constant dense<0.000000e+00> : vector<2x8x32xf32>
    %61 = tpu.matmul %60, %46, %cst_18 {dimension_numbers = #tpu.dot_dimension_numbers<[2], [1], [1], [2], [0, 0, 0, 1, 1, 2], [0], [0]>} : vector<2x8x8xf32>, vector<2x8x32xf32>, vector<2x8x32xf32> -> vector<2x8x32xf32>
    "tpu.trace_stop"() : () -> ()
    %62 = vector.shape_cast %61 : vector<2x8x32xf32> to vector<16x32xf32>
    %c0_19 = arith.constant 0 : index
    %c32 = arith.constant 32 : index
    %63 = vector.load %arg12[%c0_19, %c32] : memref<16x128xf32, #tpu.memory_space<vmem>>, vector<16x32xf32>
    tpu.vector_store %arg12[%c0_19, %c32], %62 {strides = array<i32>} : memref<16x128xf32, #tpu.memory_space<vmem>>, vector<16x32xf32>,
    %64 = vector.extract_strided_slice %9 {offsets = [0, 64], sizes = [16, 32], strides = [1, 1]} : vector<16x128xf32> to vector<16x32xf32>
    %65 = vector.shape_cast %64 : vector<16x32xf32> to vector<2x8x32xf32>
    %66 = vector.extract_strided_slice %10 {offsets = [0, 64], sizes = [16, 32], strides = [1, 1]} : vector<16x128xf32> to vector<16x32xf32>
    %67 = vector.shape_cast %66 : vector<16x32xf32> to vector<2x8x32xf32>
    %68 = vector.extract_strided_slice %11 {offsets = [0, 64], sizes = [16, 32], strides = [1, 1]} : vector<16x128xf32> to vector<16x32xf32>
    %69 = vector.shape_cast %68 : vector<16x32xf32> to vector<2x8x32xf32>
    "tpu.trace_start"() <{level = 10 : i32, message = "bqf,bkf->bqk"}> : () -> ()
    %cst_20 = arith.constant dense<0.000000e+00> : vector<2x8x8xf32>
    %70 = tpu.matmul %65, %67, %cst_20 {dimension_numbers = #tpu.dot_dimension_numbers<[2], [2], [1], [1], [0, 0, 0, 1, 1, 1], [0], [0]>} : vector<2x8x32xf32>, vector<2x8x32xf32>, vector<2x8x8xf32> -> vector<2x8x8xf32>
    "tpu.trace_stop"() : () -> ()
    %71 = vector.shape_cast %17 : vector<8x8xf32> to vector<1x8x8xf32>
    %72 = vector.broadcast %71 : vector<1x8x8xf32> to vector<2x8x8xf32>
    %73 = arith.addf %70, %72 : vector<2x8x8xf32>
    %cst_21 = arith.constant dense<0xFF800000> : vector<2x8xf32>
    %74 = vector.multi_reduction <maximumf>, %73, %cst_21 [2] : vector<2x8x8xf32> to vector<2x8xf32>
    %75 = vector.shape_cast %74 : vector<2x8xf32> to vector<2x8x1xf32>
    %76 = vector.broadcast %75 : vector<2x8x1xf32> to vector<2x8x8xf32>
    %77 = arith.subf %73, %76 : vector<2x8x8xf32>
    %78 = math.exp %77 : vector<2x8x8xf32>
    %cst_22 = arith.constant dense<0.000000e+00> : vector<2x8xf32>
    %79 = vector.multi_reduction <add>, %78, %cst_22 [2] : vector<2x8x8xf32> to vector<2x8xf32>
    %80 = vector.shape_cast %79 : vector<2x8xf32> to vector<2x8x1xf32>
    %81 = tpu.reciprocal %80 {approx = true} : vector<2x8x1xf32> -> vector<2x8x1xf32>
    %82 = vector.broadcast %81 : vector<2x8x1xf32> to vector<2x8x8xf32>
    %83 = arith.mulf %78, %82 : vector<2x8x8xf32>
    "tpu.trace_start"() <{level = 10 : i32, message = "bqk,bkf->bqf"}> : () -> ()
    %cst_23 = arith.constant dense<0.000000e+00> : vector<2x8x32xf32>
    %84 = tpu.matmul %83, %69, %cst_23 {dimension_numbers = #tpu.dot_dimension_numbers<[2], [1], [1], [2], [0, 0, 0, 1, 1, 2], [0], [0]>} : vector<2x8x8xf32>, vector<2x8x32xf32>, vector<2x8x32xf32> -> vector<2x8x32xf32>
    "tpu.trace_stop"() : () -> ()
    %85 = vector.shape_cast %84 : vector<2x8x32xf32> to vector<16x32xf32>
    %c0_24 = arith.constant 0 : index
    %c64 = arith.constant 64 : index
    %86 = vector.load %arg12[%c0_24, %c64] : memref<16x128xf32, #tpu.memory_space<vmem>>, vector<16x32xf32>
    tpu.vector_store %arg12[%c0_24, %c64], %85 {strides = array<i32>} : memref<16x128xf32, #tpu.memory_space<vmem>>, vector<16x32xf32>,
    %87 = vector.extract_strided_slice %9 {offsets = [0, 96], sizes = [16, 32], strides = [1, 1]} : vector<16x128xf32> to vector<16x32xf32>
    %88 = vector.shape_cast %87 : vector<16x32xf32> to vector<2x8x32xf32>
    %89 = vector.extract_strided_slice %10 {offsets = [0, 96], sizes = [16, 32], strides = [1, 1]} : vector<16x128xf32> to vector<16x32xf32>
    %90 = vector.shape_cast %89 : vector<16x32xf32> to vector<2x8x32xf32>
    %91 = vector.extract_strided_slice %11 {offsets = [0, 96], sizes = [16, 32], strides = [1, 1]} : vector<16x128xf32> to vector<16x32xf32>
    %92 = vector.shape_cast %91 : vector<16x32xf32> to vector<2x8x32xf32>
    "tpu.trace_start"() <{level = 10 : i32, message = "bqf,bkf->bqk"}> : () -> ()
    %cst_25 = arith.constant dense<0.000000e+00> : vector<2x8x8xf32>
    %93 = tpu.matmul %88, %90, %cst_25 {dimension_numbers = #tpu.dot_dimension_numbers<[2], [2], [1], [1], [0, 0, 0, 1, 1, 1], [0], [0]>} : vector<2x8x32xf32>, vector<2x8x32xf32>, vector<2x8x8xf32> -> vector<2x8x8xf32>
    "tpu.trace_stop"() : () -> ()
    %94 = vector.shape_cast %17 : vector<8x8xf32> to vector<1x8x8xf32>
    %95 = vector.broadcast %94 : vector<1x8x8xf32> to vector<2x8x8xf32>
    %96 = arith.addf %93, %95 : vector<2x8x8xf32>
    %cst_26 = arith.constant dense<0xFF800000> : vector<2x8xf32>
    %97 = vector.multi_reduction <maximumf>, %96, %cst_26 [2] : vector<2x8x8xf32> to vector<2x8xf32>
    %98 = vector.shape_cast %97 : vector<2x8xf32> to vector<2x8x1xf32>
    %99 = vector.broadcast %98 : vector<2x8x1xf32> to vector<2x8x8xf32>
    %100 = arith.subf %96, %99 : vector<2x8x8xf32>
    %101 = math.exp %100 : vector<2x8x8xf32>
    %cst_27 = arith.constant dense<0.000000e+00> : vector<2x8xf32>
    %102 = vector.multi_reduction <add>, %101, %cst_27 [2] : vector<2x8x8xf32> to vector<2x8xf32>
    %103 = vector.shape_cast %102 : vector<2x8xf32> to vector<2x8x1xf32>
    %104 = tpu.reciprocal %103 {approx = true} : vector<2x8x1xf32> -> vector<2x8x1xf32>
    %105 = vector.broadcast %104 : vector<2x8x1xf32> to vector<2x8x8xf32>
    %106 = arith.mulf %101, %105 : vector<2x8x8xf32>
    "tpu.trace_start"() <{level = 10 : i32, message = "bqk,bkf->bqf"}> : () -> ()
    %cst_28 = arith.constant dense<0.000000e+00> : vector<2x8x32xf32>
    %107 = tpu.matmul %106, %92, %cst_28 {dimension_numbers = #tpu.dot_dimension_numbers<[2], [1], [1], [2], [0, 0, 0, 1, 1, 2], [0], [0]>} : vector<2x8x8xf32>, vector<2x8x32xf32>, vector<2x8x32xf32> -> vector<2x8x32xf32>
    "tpu.trace_stop"() : () -> ()
    %108 = vector.shape_cast %107 : vector<2x8x32xf32> to vector<16x32xf32>
    %c0_29 = arith.constant 0 : index
    %c96 = arith.constant 96 : index
    %109 = vector.load %arg12[%c0_29, %c96] : memref<16x128xf32, #tpu.memory_space<vmem>>, vector<16x32xf32>
    tpu.vector_store %arg12[%c0_29, %c96], %108 {strides = array<i32>} : memref<16x128xf32, #tpu.memory_space<vmem>>, vector<16x32xf32>,
    %c0_30 = arith.constant 0 : index
    %c0_31 = arith.constant 0 : index
    %110 = vector.load %arg12[%c0_30, %c0_31] : memref<16x128xf32, #tpu.memory_space<vmem>>, vector<16x128xf32>
    %111 = arith.addf %110, %2 : vector<16x128xf32>
    %c0_32 = arith.constant 0 : index
    %c0_33 = arith.constant 0 : index
    %112 = vector.load %arg8[%c0_32, %c0_33] : memref<2x128xf32, #tpu.memory_space<vmem>>, vector<2x128xf32>
    %cst_34 = arith.constant dense<0.000000e+00> : vector<128xf32>
    %113 = vector.multi_reduction <add>, %111, %cst_34 [0] : vector<16x128xf32> to vector<128xf32>
    %114 = vector.shape_cast %113 : vector<128xf32> to vector<1x128xf32>
    %115 = arith.mulf %111, %111 : vector<16x128xf32>
    %cst_35 = arith.constant dense<0.000000e+00> : vector<128xf32>
    %116 = vector.multi_reduction <add>, %115, %cst_35 [0] : vector<16x128xf32> to vector<128xf32>
    %117 = vector.shape_cast %116 : vector<128xf32> to vector<1x128xf32>
    %118 = tpu.concatenate %114, %117 in 0 : vector<1x128xf32>, vector<1x128xf32> -> vector<2x128xf32>
    %c0_36 = arith.constant 0 : index
    %c0_37 = arith.constant 0 : index
    %119 = vector.load %arg10[%c0_36, %c0_37] : memref<128x128xf32, #tpu.memory_space<vmem>>, vector<128x128xf32>
    %cst_38 = arith.constant dense<0.000000e+00> : vector<2x128xf32>
    %120 = tpu.matmul %118, %119, %cst_38 {dimension_numbers = #tpu.dot_dimension_numbers<[1], [0], [0], [1], [0, 0, 1, 1], [], []>} : vector<2x128xf32>, vector<128x128xf32>, vector<2x128xf32> -> vector<2x128xf32>
    %121 = vector.extract_strided_slice %120 {offsets = [0, 0], sizes = [1, 128], strides = [1, 1]} : vector<2x128xf32> to vector<1x128xf32>
    %cst_39 = arith.constant 0.001953125 : f32
    %122 = vector.broadcast %cst_39 : f32 to vector<1x128xf32>
    %123 = arith.mulf %121, %122 : vector<1x128xf32>
    %124 = vector.extract_strided_slice %120 {offsets = [1, 0], sizes = [1, 128], strides = [1, 1]} : vector<2x128xf32> to vector<1x128xf32>
    %cst_40 = arith.constant 0.001953125 : f32
    %125 = vector.broadcast %cst_40 : f32 to vector<1x128xf32>
    %126 = arith.mulf %124, %125 : vector<1x128xf32>
    %127 = arith.mulf %123, %123 : vector<1x128xf32>
    %128 = arith.subf %126, %127 : vector<1x128xf32>
    %129 = vector.extract_strided_slice %112 {offsets = [0, 0], sizes = [1, 128], strides = [1, 1]} : vector<2x128xf32> to vector<1x128xf32>
    %cst_41 = arith.constant 9.99999974E-6 : f32
    %130 = vector.broadcast %cst_41 : f32 to vector<1x128xf32>
    %131 = arith.addf %128, %130 : vector<1x128xf32>
    %132 = math.rsqrt %131 : vector<1x128xf32>
    %133 = arith.mulf %129, %132 : vector<1x128xf32>
    %134 = vector.extract_strided_slice %112 {offsets = [1, 0], sizes = [1, 128], strides = [1, 1]} : vector<2x128xf32> to vector<1x128xf32>
    %135 = arith.mulf %123, %133 : vector<1x128xf32>
    %136 = arith.subf %134, %135 : vector<1x128xf32>
    %137 = vector.broadcast %133 : vector<1x128xf32> to vector<16x128xf32>
    %138 = arith.mulf %111, %137 : vector<16x128xf32>
    %139 = vector.broadcast %136 : vector<1x128xf32> to vector<16x128xf32>
    %140 = arith.addf %138, %139 : vector<16x128xf32>
    %141 = arith.truncf %140 : vector<16x128xf32> to vector<16x128xbf16>
    %c0_42 = arith.constant 0 : index
    %c0_43 = arith.constant 0 : index
    %142 = vector.load %arg4[%c0_42, %c0_43] : memref<128x128xbf16, #tpu.memory_space<vmem>>, vector<128x128xbf16>
    %cst_44 = arith.constant dense<0.000000e+00> : vector<16x128xf32>
    %143 = tpu.matmul %141, %142, %cst_44 {dimension_numbers = #tpu.dot_dimension_numbers<[1], [0], [0], [1], [0, 0, 1, 1], [], []>} : vector<16x128xbf16>, vector<128x128xbf16>, vector<16x128xf32> -> vector<16x128xf32>
    %c0_45 = arith.constant 0 : index
    %c0_46 = arith.constant 0 : index
    %144 = vector.load %arg5[%c0_45, %c0_46] : memref<1x128xf32, #tpu.memory_space<vmem>>, vector<1x128xf32>
    %145 = vector.broadcast %144 : vector<1x128xf32> to vector<16x128xf32>
    %146 = arith.addf %143, %145 : vector<16x128xf32>
    %cst_47 = arith.constant 0.000000e+00 : f32
    %147 = vector.broadcast %cst_47 : f32 to vector<16x128xf32>
    %148 = arith.maximumf %146, %147 : vector<16x128xf32>
    %149 = arith.addf %148, %140 : vector<16x128xf32>
    %c0_48 = arith.constant 0 : index
    %c0_49 = arith.constant 0 : index
    %150 = vector.load %arg9[%c0_48, %c0_49] : memref<2x128xf32, #tpu.memory_space<vmem>>, vector<2x128xf32>
    %cst_50 = arith.constant dense<0.000000e+00> : vector<128xf32>
    %151 = vector.multi_reduction <add>, %149, %cst_50 [0] : vector<16x128xf32> to vector<128xf32>
    %152 = vector.shape_cast %151 : vector<128xf32> to vector<1x128xf32>
    %153 = arith.mulf %149, %149 : vector<16x128xf32>
    %cst_51 = arith.constant dense<0.000000e+00> : vector<128xf32>
    %154 = vector.multi_reduction <add>, %153, %cst_51 [0] : vector<16x128xf32> to vector<128xf32>
    %155 = vector.shape_cast %154 : vector<128xf32> to vector<1x128xf32>
    %156 = tpu.concatenate %152, %155 in 0 : vector<1x128xf32>, vector<1x128xf32> -> vector<2x128xf32>
    %c0_52 = arith.constant 0 : index
    %c0_53 = arith.constant 0 : index
    %157 = vector.load %arg10[%c0_52, %c0_53] : memref<128x128xf32, #tpu.memory_space<vmem>>, vector<128x128xf32>
    %cst_54 = arith.constant dense<0.000000e+00> : vector<2x128xf32>
    %158 = tpu.matmul %156, %157, %cst_54 {dimension_numbers = #tpu.dot_dimension_numbers<[1], [0], [0], [1], [0, 0, 1, 1], [], []>} : vector<2x128xf32>, vector<128x128xf32>, vector<2x128xf32> -> vector<2x128xf32>
    %159 = vector.extract_strided_slice %158 {offsets = [0, 0], sizes = [1, 128], strides = [1, 1]} : vector<2x128xf32> to vector<1x128xf32>
    %cst_55 = arith.constant 0.001953125 : f32
    %160 = vector.broadcast %cst_55 : f32 to vector<1x128xf32>
    %161 = arith.mulf %159, %160 : vector<1x128xf32>
    %162 = vector.extract_strided_slice %158 {offsets = [1, 0], sizes = [1, 128], strides = [1, 1]} : vector<2x128xf32> to vector<1x128xf32>
    %cst_56 = arith.constant 0.001953125 : f32
    %163 = vector.broadcast %cst_56 : f32 to vector<1x128xf32>
    %164 = arith.mulf %162, %163 : vector<1x128xf32>
    %165 = arith.mulf %161, %161 : vector<1x128xf32>
    %166 = arith.subf %164, %165 : vector<1x128xf32>
    %167 = vector.extract_strided_slice %150 {offsets = [0, 0], sizes = [1, 128], strides = [1, 1]} : vector<2x128xf32> to vector<1x128xf32>
    %cst_57 = arith.constant 9.99999974E-6 : f32
    %168 = vector.broadcast %cst_57 : f32 to vector<1x128xf32>
    %169 = arith.addf %166, %168 : vector<1x128xf32>
    %170 = math.rsqrt %169 : vector<1x128xf32>
    %171 = arith.mulf %167, %170 : vector<1x128xf32>
    %172 = vector.extract_strided_slice %150 {offsets = [1, 0], sizes = [1, 128], strides = [1, 1]} : vector<2x128xf32> to vector<1x128xf32>
    %173 = arith.mulf %161, %171 : vector<1x128xf32>
    %174 = arith.subf %172, %173 : vector<1x128xf32>
    %175 = vector.broadcast %171 : vector<1x128xf32> to vector<16x128xf32>
    %176 = arith.mulf %149, %175 : vector<16x128xf32>
    %177 = vector.broadcast %174 : vector<1x128xf32> to vector<16x128xf32>
    %178 = arith.addf %176, %177 : vector<16x128xf32>
    %179 = arith.truncf %178 : vector<16x128xf32> to vector<16x128xbf16>
    %c0_58 = arith.constant 0 : index
    %c0_59 = arith.constant 0 : index
    %180 = vector.load %arg6[%c0_58, %c0_59] : memref<128x128xbf16, #tpu.memory_space<vmem>>, vector<128x128xbf16>
    %cst_60 = arith.constant dense<0.000000e+00> : vector<16x128xf32>
    %181 = tpu.matmul %179, %180, %cst_60 {dimension_numbers = #tpu.dot_dimension_numbers<[1], [0], [0], [1], [0, 0, 1, 1], [], []>} : vector<16x128xbf16>, vector<128x128xbf16>, vector<16x128xf32> -> vector<16x128xf32>
    %c0_61 = arith.constant 0 : index
    %c0_62 = arith.constant 0 : index
    %182 = vector.load %arg7[%c0_61, %c0_62] : memref<1x128xf32, #tpu.memory_space<vmem>>, vector<1x128xf32>
    %183 = vector.broadcast %182 : vector<1x128xf32> to vector<16x128xf32>
    %184 = arith.addf %181, %183 : vector<16x128xf32>
    %c0_63 = arith.constant 0 : index
    %c0_64 = arith.constant 0 : index
    %185 = vector.load %arg11[%c0_63, %c0_64] : memref<16x128xf32, #tpu.memory_space<vmem>>, vector<16x128xf32>
    tpu.vector_store %arg11[%c0_63, %c0_64], %184 {strides = array<i32>} : memref<16x128xf32, #tpu.memory_space<vmem>>, vector<16x128xf32>,
    return
  }
}

</mosaic_0001>

<llo_original>
// kernel: tile.13
$region0: #{tile.13}
  #allocation0 [shape = 's32[1]{0}', space=sflag, size = 0x4, scoped, tag = 'scoped memory for tile.13']
  %s0 = inlined_call_operand.vmem [shape: f32[8,32], index: 0, kind: input, shape index: {}]
  %s1 = inlined_call_operand.vmem [shape: f32[2,8,4,32], index: 1, kind: output, shape index: {}]
  // Predicated region
  $region2: #{tile.13} parent=0 // pred_check
    _
  $region3: #{tile.13} parent=0 // pred_check_branch
    %3 = sbr.rel (0) target = $region5
  $region4: #{tile.13} parent=0 // pred_region
    _
  $region5: #{tile.13} parent=0 // pred_fallthru
    _
  %v4 = vld [vmem:[%s0] ss:$0 sm:$0xff]
  %5 = vst [vmem:[%s1] sm:$0xf] %v4
  %s6 = scalar_lea.vmem %s1, 32
  %7 = vst [vmem:[%s6] sm:$0xf] %v4
  %s8 = scalar_lea.vmem %s0, 1
  %v9 = vld [vmem:[%s8] ss:$0 sm:$0xff]
  %s10 = scalar_lea.vmem %s1, 4
  %11 = vst [vmem:[%s10] sm:$0xf] %v9
  %s12 = scalar_lea.vmem %s1, 36
  %13 = vst [vmem:[%s12] sm:$0xf] %v9
  %s14 = scalar_lea.vmem %s0, 2
  %v15 = vld [vmem:[%s14] ss:$0 sm:$0xff]
  %s16 = scalar_lea.vmem %s1, 8
  %17 = vst [vmem:[%s16] sm:$0xf] %v15
  %s18 = scalar_lea.vmem %s1, 40
  %19 = vst [vmem:[%s18] sm:$0xf] %v15
  %s20 = scalar_lea.vmem %s0, 3
  %v21 = vld [vmem:[%s20] ss:$0 sm:$0xff]
  %s22 = scalar_lea.vmem %s1, 12
  %23 = vst [vmem:[%s22] sm:$0xf] %v21
  %s24 = scalar_lea.vmem %s1, 44
  %25 = vst [vmem:[%s24] sm:$0xf] %v21
  %s26 = scalar_lea.vmem %s0, 4
  %v27 = vld [vmem:[%s26] ss:$0 sm:$0xff]
  %s28 = scalar_lea.vmem %s1, 16
  %29 = vst [vmem:[%s28] sm:$0xf] %v27
  %s30 = scalar_lea.vmem %s1, 48
  %31 = vst [vmem:[%s30] sm:$0xf] %v27
  %s32 = scalar_lea.vmem %s0, 5
  %v33 = vld [vmem:[%s32] ss:$0 sm:$0xff]
  %s34 = scalar_lea.vmem %s1, 20
  %35 = vst [vmem:[%s34] sm:$0xf] %v33
  %s36 = scalar_lea.vmem %s1, 52
  %37 = vst [vmem:[%s36] sm:$0xf] %v33
  %s38 = scalar_lea.vmem %s0, 6
  %v39 = vld [vmem:[%s38] ss:$0 sm:$0xff]
  %s40 = scalar_lea.vmem %s1, 24
  %41 = vst [vmem:[%s40] sm:$0xf] %v39
  %s42 = scalar_lea.vmem %s1, 56
  %43 = vst [vmem:[%s42] sm:$0xf] %v39
  %s44 = scalar_lea.vmem %s0, 7
  %v45 = vld [vmem:[%s44] ss:$0 sm:$0xff]
  %s46 = scalar_lea.vmem %s1, 28
  %47 = vst [vmem:[%s46] sm:$0xf] %v45
  %s48 = scalar_lea.vmem %s1, 60
  %49 = vst [vmem:[%s48] sm:$0xf] %v45

// kernel: tile.14
$region0: #{tile.14}
  %s0 = inlined_call_operand.vmem [shape: f32[2,8,4,32], index: 0, kind: input, shape index: {}]
  %s1 = inlined_call_operand.vmem [shape: f32[16,128], index: 1, kind: output, shape index: {}]
  $region1: #{tile.14} parent=0
    #allocation0 [shape = 'u8[65536]{0}', space=vmem, size = 0x10000, scoped, tag = 'scoped mem for input reshape']
    %s3 = ssub.s32 16, 1
    %s4 = scalar_lea.vmem %s0, 60
    %v5 = vld [vmem:[%s4] sm:%s3]
    %s6 = scalar_lea.vmem [#allocation0], 120
    %7 = vst [vmem:[%s6] sm:%s3] %v5
    %s8 = scalar_lea.vmem %s0, 56
    %v9 = vld [vmem:[%s8] sm:%s3]
    %s10 = scalar_lea.vmem [#allocation0], 112
    %11 = vst [vmem:[%s10] sm:%s3] %v9
    %s12 = scalar_lea.vmem %s0, 52
    %v13 = vld [vmem:[%s12] sm:%s3]
    %s14 = scalar_lea.vmem [#allocation0], 104
    %15 = vst [vmem:[%s14] sm:%s3] %v13
    %s16 = scalar_lea.vmem %s0, 48
    %v17 = vld [vmem:[%s16] sm:%s3]
    %s18 = scalar_lea.vmem [#allocation0], 96
    %19 = vst [vmem:[%s18] sm:%s3] %v17
    %s20 = scalar_lea.vmem %s0, 44
    %v21 = vld [vmem:[%s20] sm:%s3]
    %s22 = scalar_lea.vmem [#allocation0], 88
    %23 = vst [vmem:[%s22] sm:%s3] %v21
    %s24 = scalar_lea.vmem %s0, 40
    %v25 = vld [vmem:[%s24] sm:%s3]
    %s26 = scalar_lea.vmem [#allocation0], 80
    %27 = vst [vmem:[%s26] sm:%s3] %v25
    %s28 = scalar_lea.vmem %s0, 36
    %v29 = vld [vmem:[%s28] sm:%s3]
    %s30 = scalar_lea.vmem [#allocation0], 72
    %31 = vst [vmem:[%s30] sm:%s3] %v29
    %s32 = scalar_lea.vmem %s0, 32
    %v33 = vld [vmem:[%s32] sm:%s3]
    %s34 = scalar_lea.vmem [#allocation0], 64
    %35 = vst [vmem:[%s34] sm:%s3] %v33
    %s36 = scalar_lea.vmem %s0, 28
    %v37 = vld [vmem:[%s36] sm:%s3]
    %s38 = scalar_lea.vmem [#allocation0], 56
    %39 = vst [vmem:[%s38] sm:%s3] %v37
    %s40 = scalar_lea.vmem %s0, 24
    %v41 = vld [vmem:[%s40] sm:%s3]
    %s42 = scalar_lea.vmem [#allocation0], 48
    %43 = vst [vmem:[%s42] sm:%s3] %v41
    %s44 = scalar_lea.vmem %s0, 20
    %v45 = vld [vmem:[%s44] sm:%s3]
    %s46 = scalar_lea.vmem [#allocation0], 40
    %47 = vst [vmem:[%s46] sm:%s3] %v45
    %s48 = scalar_lea.vmem %s0, 16
    %v49 = vld [vmem:[%s48] sm:%s3]
    %s50 = scalar_lea.vmem [#allocation0], 32
    %51 = vst [vmem:[%s50] sm:%s3] %v49
    %s52 = scalar_lea.vmem %s0, 12
    %v53 = vld [vmem:[%s52] sm:%s3]
    %s54 = scalar_lea.vmem [#allocation0], 24
    %55 = vst [vmem:[%s54] sm:%s3] %v53
    %s56 = scalar_lea.vmem %s0, 8
    %v57 = vld [vmem:[%s56] sm:%s3]
    %s58 = scalar_lea.vmem [#allocation0], 16
    %59 = vst [vmem:[%s58] sm:%s3] %v57
    %s60 = scalar_lea.vmem %s0, 4
    %v61 = vld [vmem:[%s60] sm:%s3]
    %s62 = scalar_lea.vmem [#allocation0], 8
    %63 = vst [vmem:[%s62] sm:%s3] %v61
    %v64 = vld [vmem:[%s0] sm:%s3]
    %65 = vst [vmem:[#allocation0] sm:%s3] %v64
    %v66 = vld [vmem:[#allocation0] ss:$8 sm:$0xf]
    %v67 = vld [vmem:[#allocation0] ss:$8 sm:$0xf0]
    %vm68 = vcmask 1047556
    %v69 = vsel %vm68, %v67, %v66
    %vm70 = vcmask 261120
    %71 = vst.msk [vmem:[%s1] sm:$0xff] %vm70, %v69
    %s72 = scalar_lea.vmem [#allocation0], 64
    %v73 = vld [vmem:[%s72] ss:$8 sm:$0xf]
    %s74 = scalar_lea.vmem [#allocation0], 64
    %v75 = vld [vmem:[%s74] ss:$8 sm:$0xf0]
    %vm76 = vcmask 1047556
    %v77 = vsel %vm76, %v75, %v73
    %vm78 = vcmask 261120
    %s79 = scalar_lea.vmem %s1, 8
    %80 = vst.msk [vmem:[%s79] sm:$0xff] %vm78, %v77
    %s81 = scalar_lea.vmem [#allocation0], 3
    %v82 = vld [vmem:[%s81] ss:$8 sm:$0xf]
    %s83 = scalar_lea.vmem [#allocation0], 3
    %v84 = vld [vmem:[%s83] ss:$8 sm:$0xf0]
    %vm85 = vcmask 1047556
    %v86 = vsel %vm85, %v84, %v82
    %87 = vrot.lane.b32.xlu0 %v86, 96
    %v88 = vpop.permute.xlu0 %87
    %vm89 = vcmask 1048320
    %90 = vst.msk [vmem:[%s1] sm:$0xff] %vm89, %v88
    %s91 = scalar_lea.vmem [#allocation0], 67
    %v92 = vld [vmem:[%s91] ss:$8 sm:$0xf]
    %s93 = scalar_lea.vmem [#allocation0], 67
    %v94 = vld [vmem:[%s93] ss:$8 sm:$0xf0]
    %vm95 = vcmask 1047556
    %v96 = vsel %vm95, %v94, %v92
    %97 = vrot.lane.b32.xlu0 %v96, 96
    %v98 = vpop.permute.xlu0 %97
    %vm99 = vcmask 1048320
    %s100 = scalar_lea.vmem %s1, 8
    %101 = vst.msk [vmem:[%s100] sm:$0xff] %vm99, %v98
    %s102 = scalar_lea.vmem [#allocation0], 2
    %v103 = vld [vmem:[%s102] ss:$8 sm:$0xf]
    %s104 = scalar_lea.vmem [#allocation0], 2
    %v105 = vld [vmem:[%s104] ss:$8 sm:$0xf0]
    %vm106 = vcmask 1047556
    %v107 = vsel %vm106, %v105, %v103
    %108 = vrot.lane.b32.xlu0 %v107, 64
    %v109 = vpop.permute.xlu0 %108
    %vm110 = vcmask 785920
    %111 = vst.msk [vmem:[%s1] sm:$0xff] %vm110, %v109
    %s112 = scalar_lea.vmem [#allocation0], 66
    %v113 = vld [vmem:[%s112] ss:$8 sm:$0xf]
    %s114 = scalar_lea.vmem [#allocation0], 66
    %v115 = vld [vmem:[%s114] ss:$8 sm:$0xf0]
    %vm116 = vcmask 1047556
    %v117 = vsel %vm116, %v115, %v113
    %118 = vrot.lane.b32.xlu0 %v117, 64
    %v119 = vpop.permute.xlu0 %118
    %vm120 = vcmask 785920
    %s121 = scalar_lea.vmem %s1, 8
    %122 = vst.msk [vmem:[%s121] sm:$0xff] %vm120, %v119
    %s123 = scalar_lea.vmem [#allocation0], 1
    %v124 = vld [vmem:[%s123] ss:$8 sm:$0xf]
    %s125 = scalar_lea.vmem [#allocation0], 1
    %v126 = vld [vmem:[%s125] ss:$8 sm:$0xf0]
    %vm127 = vcmask 1047556
    %v128 = vsel %vm127, %v126, %v124
    %129 = vrot.lane.b32.xlu0 %v128, 32
    %v130 = vpop.permute.xlu0 %129
    %vm131 = vcmask 523520
    %132 = vst.msk [vmem:[%s1] sm:$0xff] %vm131, %v130
    %s133 = scalar_lea.vmem [#allocation0], 65
    %v134 = vld [vmem:[%s133] ss:$8 sm:$0xf]
    %s135 = scalar_lea.vmem [#allocation0], 65
    %v136 = vld [vmem:[%s135] ss:$8 sm:$0xf0]
    %vm137 = vcmask 1047556
    %v138 = vsel %vm137, %v136, %v134
    %139 = vrot.lane.b32.xlu0 %v138, 32
    %v140 = vpop.permute.xlu0 %139
    %vm141 = vcmask 523520
    %s142 = scalar_lea.vmem %s1, 8
    %143 = vst.msk [vmem:[%s142] sm:$0xff] %vm141, %v140

// kernel: model_forward.1
$region0: #{model_forward.1}
  #allocation0 [shape = 'u32[]', space=smem, size = 0x4, offset = 0x4, fixed_abs, tag = 'smem constant byte address 0x4 - core index']
  #allocation1 [shape = 'u32[72,128]{1,0:T(1,128)}', space=vmem, size = 0x9000, scoped, tag = 'internal scratch']
  #allocation2 [shape = 'f32[16,128]{1,0:T(8,128)}', space=vmem, size = 0x2000, scoped, tag = 'scratch operand']
  %s0 = inlined_call_operand.vmem [shape: f32[16,128], index: 0, kind: input, shape index: {}]
  %s1 = inlined_call_operand.vmem [shape: f32[16,128], index: 1, kind: input, shape index: {}]
  %s2 = inlined_call_operand.vmem [shape: bf16[128,384], index: 2, kind: input, shape index: {}]
  %s3 = inlined_call_operand.vmem [shape: f32[1,384], index: 3, kind: input, shape index: {}]
  %s4 = inlined_call_operand.vmem [shape: bf16[128,128], index: 4, kind: input, shape index: {}]
  %s5 = inlined_call_operand.vmem [shape: f32[1,128], index: 5, kind: input, shape index: {}]
  %s6 = inlined_call_operand.vmem [shape: bf16[128,128], index: 6, kind: input, shape index: {}]
  %s7 = inlined_call_operand.vmem [shape: f32[1,128], index: 7, kind: input, shape index: {}]
  %s8 = inlined_call_operand.vmem [shape: f32[2,128], index: 8, kind: input, shape index: {}]
  %s9 = inlined_call_operand.vmem [shape: f32[2,128], index: 9, kind: input, shape index: {}]
  %s10 = inlined_call_operand.vmem [shape: f32[128,128], index: 10, kind: input, shape index: {}]
  %s11 = inlined_call_operand.hbm [shape: f32[16,128], index: 11, kind: output, shape index: {}]
  %s12 = sld [smem:[#allocation0]]
  $region54: #{model_forward.1} parent=0
    _
  %s14 = ssub.s32 1, %s12
  %s15 = scalar_select 0, %s14, %s12
  $region1: #{model_forward.1} parent=0
    #allocation3 [shape = 'u8[8192]{0}', space=vmem, size = 0x2000, scoped, tag = 'output window, operand 0, single buffered']
    #allocation4 [shape = 's32[1]{0}', space=sflag, size = 0x4, scoped, tag = 'scoped memory for model_forward.1']
    %16 = vsyncpa [#allocation4], 0
    // Predicated region
    $region2: #{model_forward.1} parent=1 // pred_check
      _
    $region3: #{model_forward.1} parent=1 // pred_check_branch
      %18 = sbr.rel (0) target = $region5
    $region4: #{model_forward.1} parent=1 // pred_region
      _
    $region5: #{model_forward.1} parent=1 // pred_fallthru
      _
    // Predicated region
    $region6: #{model_forward.1} parent=1 // pred_check
      _
    $region7: #{model_forward.1} parent=1 // pred_check_branch
      %20 = sbr.rel (0) target = $region9
    $region8: #{model_forward.1} parent=1 // pred_region
      _
    $region9: #{model_forward.1} parent=1 // pred_fallthru
      _
    // Predicated region
    $region10: #{model_forward.1} parent=1 // pred_check
      _
    $region11: #{model_forward.1} parent=1 // pred_check_branch
      %22 = sbr.rel (0) target = $region13
    $region12: #{model_forward.1} parent=1 // pred_region
      _
    $region13: #{model_forward.1} parent=1 // pred_fallthru
      _
    // Predicated region
    $region14: #{model_forward.1} parent=1 // pred_check
      _
    $region15: #{model_forward.1} parent=1 // pred_check_branch
      %24 = sbr.rel (0) target = $region17
    $region16: #{model_forward.1} parent=1 // pred_region
      _
    $region17: #{model_forward.1} parent=1 // pred_fallthru
      _
    // Predicated region
    $region18: #{model_forward.1} parent=1 // pred_check
      _
    $region19: #{model_forward.1} parent=1 // pred_check_branch
      %26 = sbr.rel (0) target = $region21
    $region20: #{model_forward.1} parent=1 // pred_region
      _
    $region21: #{model_forward.1} parent=1 // pred_fallthru
      _
    // Predicated region
    $region22: #{model_forward.1} parent=1 // pred_check
      _
    $region23: #{model_forward.1} parent=1 // pred_check_branch
      %28 = sbr.rel (0) target = $region25
    $region24: #{model_forward.1} parent=1 // pred_region
      _
    $region25: #{model_forward.1} parent=1 // pred_fallthru
      _
    // Predicated region
    $region26: #{model_forward.1} parent=1 // pred_check
      _
    $region27: #{model_forward.1} parent=1 // pred_check_branch
      %30 = sbr.rel (0) target = $region29
    $region28: #{model_forward.1} parent=1 // pred_region
      _
    $region29: #{model_forward.1} parent=1 // pred_fallthru
      _
    // Predicated region
    $region30: #{model_forward.1} parent=1 // pred_check
      _
    $region31: #{model_forward.1} parent=1 // pred_check_branch
      %32 = sbr.rel (0) target = $region33
    $region32: #{model_forward.1} parent=1 // pred_region
      _
    $region33: #{model_forward.1} parent=1 // pred_fallthru
      _
    // Predicated region
    $region34: #{model_forward.1} parent=1 // pred_check
      _
    $region35: #{model_forward.1} parent=1 // pred_check_branch
      %34 = sbr.rel (0) target = $region37
    $region36: #{model_forward.1} parent=1 // pred_region
      _
    $region37: #{model_forward.1} parent=1 // pred_fallthru
      _
    // Predicated region
    $region38: #{model_forward.1} parent=1 // pred_check
      _
    $region39: #{model_forward.1} parent=1 // pred_check_branch
      %36 = sbr.rel (0) target = $region41
    $region40: #{model_forward.1} parent=1 // pred_region
      _
    $region41: #{model_forward.1} parent=1 // pred_fallthru
      _
    // Predicated region
    $region42: #{model_forward.1} parent=1 // pred_check
      _
    $region43: #{model_forward.1} parent=1 // pred_check_branch
      %38 = sbr.rel (0) target = $region45
    $region44: #{model_forward.1} parent=1 // pred_region
      _
    $region45: #{model_forward.1} parent=1 // pred_fallthru
      _
    %v39 = vld [vmem:[%s0] sm:$0xff]
    %v40 = vld [vmem:[%s0 + $0x8] sm:$0xff]
    %v41 = vld [vmem:[%s1] sm:$0xff]
    %v42 = vld [vmem:[%s1 + $0x8] sm:$0xff]
    %v43 = vadd.f32 %v39, %v41
    %v44 = vadd.f32 %v40, %v42
    %v45 = vpack.c.bf16 %v44, %v43
    %v46 = vld [vmem:[%s2] sm:$0xff]
    %v47 = vld [vmem:[%s2 + $0x8] sm:$0xf]
    %v48 = vld [vmem:[%s2 + $0xc] sm:$0xff]
    %v49 = vld [vmem:[%s2 + $0x14] sm:$0xf]
    %v50 = vld [vmem:[%s2 + $0x18] sm:$0xff]
    %v51 = vld [vmem:[%s2 + $0x20] sm:$0xf]
    %v52 = vld [vmem:[%s2 + $0x24] sm:$0xff]
    %v53 = vld [vmem:[%s2 + $0x2c] sm:$0xf]
    %v54 = vld [vmem:[%s2 + $0x30] sm:$0xff]
    %v55 = vld [vmem:[%s2 + $0x38] sm:$0xf]
    %v56 = vld [vmem:[%s2 + $0x3c] sm:$0xff]
    %v57 = vld [vmem:[%s2 + $0x44] sm:$0xf]
    %v58 = vld [vmem:[%s2 + $0x48] sm:$0xff]
    %v59 = vld [vmem:[%s2 + $0x50] sm:$0xf]
    %v60 = vld [vmem:[%s2 + $0x54] sm:$0xff]
    %v61 = vld [vmem:[%s2 + $0x5c] sm:$0xf]
    %v62 = vld [vmem:[%s2 + $0x60] sm:$0xff]
    %v63 = vld [vmem:[%s2 + $0x68] sm:$0xf]
    %v64 = vld [vmem:[%s2 + $0x6c] sm:$0xff]
    %v65 = vld [vmem:[%s2 + $0x74] sm:$0xf]
    %v66 = vld [vmem:[%s2 + $0x78] sm:$0xff]
    %v67 = vld [vmem:[%s2 + $0x80] sm:$0xf]
    %v68 = vld [vmem:[%s2 + $0x84] sm:$0xff]
    %v69 = vld [vmem:[%s2 + $0x8c] sm:$0xf]
    %v70 = vld [vmem:[%s2 + $0x90] sm:$0xff]
    %v71 = vld [vmem:[%s2 + $0x98] sm:$0xf]
    %v72 = vld [vmem:[%s2 + $0x9c] sm:$0xff]
    %v73 = vld [vmem:[%s2 + $0xa4] sm:$0xf]
    %v74 = vld [vmem:[%s2 + $0xa8] sm:$0xff]
    %v75 = vld [vmem:[%s2 + $0xb0] sm:$0xf]
    %v76 = vld [vmem:[%s2 + $0xb4] sm:$0xff]
    %v77 = vld [vmem:[%s2 + $0xbc] sm:$0xf]
    %v78 = vld [vmem:[%s3] sm:$0x7]
    %v80 = vperm.slane %v78, 0
    %v81 = vperm.slane %v78, 1
    %v82 = vperm.slane %v78, 2
    %v118 = vunpack.c.l.b16 %v46
    %v119 = vunpack.c.h.b16 %v46
    %v120 = vunpack.c.l.b16 %v47
    %v121 = vunpack.c.l.b16 %v48
    %v122 = vunpack.c.h.b16 %v48
    %v123 = vunpack.c.l.b16 %v49
    %v124 = vunpack.c.l.b16 %v50
    %v125 = vunpack.c.h.b16 %v50
    %v126 = vunpack.c.l.b16 %v51
    %v127 = vunpack.c.l.b16 %v52
    %v128 = vunpack.c.h.b16 %v52
    %v129 = vunpack.c.l.b16 %v53
    %v130 = vunpack.c.l.b16 %v54
    %v131 = vunpack.c.h.b16 %v54
    %v132 = vunpack.c.l.b16 %v55
    %v133 = vunpack.c.l.b16 %v56
    %v134 = vunpack.c.h.b16 %v56
    %v135 = vunpack.c.l.b16 %v57
    %v136 = vunpack.c.l.b16 %v58
    %v137 = vunpack.c.h.b16 %v58
    %v138 = vunpack.c.l.b16 %v59
    %v139 = vunpack.c.l.b16 %v60
    %v140 = vunpack.c.h.b16 %v60
    %v141 = vunpack.c.l.b16 %v61
    %v142 = vunpack.c.l.b16 %v62
    %v143 = vunpack.c.h.b16 %v62
    %v144 = vunpack.c.l.b16 %v63
    %v145 = vunpack.c.l.b16 %v64
    %v146 = vunpack.c.h.b16 %v64
    %v147 = vunpack.c.l.b16 %v65
    %v148 = vunpack.c.l.b16 %v66
    %v149 = vunpack.c.h.b16 %v66
    %v150 = vunpack.c.l.b16 %v67
    %v151 = vunpack.c.l.b16 %v68
    %v152 = vunpack.c.h.b16 %v68
    %v153 = vunpack.c.l.b16 %v69
    %v154 = vunpack.c.l.b16 %v70
    %v155 = vunpack.c.h.b16 %v70
    %v156 = vunpack.c.l.b16 %v71
    %v157 = vunpack.c.l.b16 %v72
    %v158 = vunpack.c.h.b16 %v72
    %v159 = vunpack.c.l.b16 %v73
    %v160 = vunpack.c.l.b16 %v74
    %v161 = vunpack.c.h.b16 %v74
    %v162 = vunpack.c.l.b16 %v75
    %v163 = vunpack.c.l.b16 %v76
    %v164 = vunpack.c.h.b16 %v76
    %v165 = vunpack.c.l.b16 %v77
    %v166 = vpack.c.b16 %v121, %v118
    %v167 = vpack.c.b16 %v122, %v119
    %v168 = vpack.c.b16 %v123, %v120
    %v169 = vpack.c.b16 %v127, %v124
    %v170 = vpack.c.b16 %v128, %v125
    %v171 = vpack.c.b16 %v129, %v126
    %v172 = vpack.c.b16 %v133, %v130
    %v173 = vpack.c.b16 %v134, %v131
    %v174 = vpack.c.b16 %v135, %v132
    %v175 = vpack.c.b16 %v139, %v136
    %v176 = vpack.c.b16 %v140, %v137
    %v177 = vpack.c.b16 %v141, %v138
    %v178 = vpack.c.b16 %v145, %v142
    %v179 = vpack.c.b16 %v146, %v143
    %v180 = vpack.c.b16 %v147, %v144
    %v181 = vpack.c.b16 %v151, %v148
    %v182 = vpack.c.b16 %v152, %v149
    %v183 = vpack.c.b16 %v153, %v150
    %v184 = vpack.c.b16 %v157, %v154
    %v185 = vpack.c.b16 %v158, %v155
    %v186 = vpack.c.b16 %v159, %v156
    %v187 = vpack.c.b16 %v163, %v160
    %v188 = vpack.c.b16 %v164, %v161
    %v189 = vpack.c.b16 %v165, %v162
    %214 = vmatpush.bf16.msra.mxu0 %v187
    %215 = vmatpush.bf16.msra.mxu0 %v184
    %216 = vmatpush.bf16.msra.mxu0 %v181
    %217 = vmatpush.bf16.msra.mxu0 %v178
    %218 = vmatpush.bf16.msra.mxu0 %v175
    %219 = vmatpush.bf16.msra.mxu0 %v172
    %220 = vmatpush.bf16.msra.mxu0 %v169
    %221 = vmatpush.bf16.msra.mxu0 %v166
    %222 = vmatmul.bf16.gmra.mxu0 %v45
    %v223 = vpop.f32.mrf.mxu0
    %v224 = vadd.f32 %v80, %v223
    %v225 = vpop.f32.mrf.mxu0
    %v226 = vadd.f32 %v80, %v225
    %227 = vdwg.mxu0
    %228 = vmatpush.bf16.msra.mxu0 %v188
    %229 = vmatpush.bf16.msra.mxu0 %v185
    %230 = vmatpush.bf16.msra.mxu0 %v182
    %231 = vmatpush.bf16.msra.mxu0 %v179
    %232 = vmatpush.bf16.msra.mxu0 %v176
    %233 = vmatpush.bf16.msra.mxu0 %v173
    %234 = vmatpush.bf16.msra.mxu0 %v170
    %235 = vmatpush.bf16.msra.mxu0 %v167
    %236 = vmatmul.bf16.gmra.mxu0 %v45
    %v237 = vpop.f32.mrf.mxu0
    %v238 = vadd.f32 %v81, %v237
    %v239 = vpop.f32.mrf.mxu0
    %v240 = vadd.f32 %v81, %v239
    %241 = vdwg.mxu0
    %242 = vmatpush.bf16.msra.mxu0 %v189
    %243 = vmatpush.bf16.msra.mxu0 %v186
    %244 = vmatpush.bf16.msra.mxu0 %v183
    %245 = vmatpush.bf16.msra.mxu0 %v180
    %246 = vmatpush.bf16.msra.mxu0 %v177
    %247 = vmatpush.bf16.msra.mxu0 %v174
    %248 = vmatpush.bf16.msra.mxu0 %v171
    %249 = vmatpush.bf16.msra.mxu0 %v168
    %250 = vmatmul.bf16.gmra.mxu0 %v45
    %v251 = vpop.f32.mrf.mxu0
    %v252 = vadd.f32 %v82, %v251
    %v253 = vpop.f32.mrf.mxu0
    %v254 = vadd.f32 %v82, %v253
    %255 = vdwg.mxu0
    %v256 = vlaneseq
    %v257 = vshrl.u32 %v256, 7
    %v258 = vlaneseq
    %v259 = vand.u32 %v258, 127
    %vm260 = vcmp.gt.s32.totalorder %v259, %v257
    %v261 = vsel %vm260, -1e+30, 0.0
    %vm262 = vcmask 261120
    %v264 = vsel %vm262, %v224, 0
    %v267 = vsel %vm262, %v238, 0
    %269 = vmatpush.xpose.msra.mxu0 0.0
    %270 = vmatpush.xpose.msra.mxu0 0.0
    %271 = vmatpush.xpose.msra.mxu0 0.0
    %272 = vmatpush.xpose.msra.mxu0 0.0
    %273 = vmatpush.xpose.msra.mxu0 0.0
    %274 = vmatpush.xpose.msra.mxu0 0.0
    %275 = vmatpush.xpose.msra.mxu0 0.0
    %276 = vmatpush.xpose.msra.mxu0 0.0
    %277 = vmatpush.xpose.msra.mxu0 0.0
    %278 = vmatpush.xpose.msra.mxu0 0.0
    %279 = vmatpush.xpose.msra.mxu0 0.0
    %280 = vmatpush.xpose.msra.mxu0 0.0
    %281 = vmatpush.xpose.msra.mxu0 0.0
    %282 = vmatpush.xpose.msra.mxu0 0.0
    %283 = vmatpush.xpose.msra.mxu0 0.0
    %284 = vmatpush.xpose.msra.mxu0 %v267
    %285 = vmatmul.f32.gmra.mxu0 %v264
    %v286 = vpop.f32.mrf.mxu0
    %v287 = vadd.f32 %v261, %v286
    %288 = vdwg.mxu0
    %v290 = vsel %vm262, %v226, 0
    %v293 = vsel %vm262, %v240, 0
    %295 = vmatpush.xpose.msra.mxu0 0.0
    %296 = vmatpush.xpose.msra.mxu0 0.0
    %297 = vmatpush.xpose.msra.mxu0 0.0
    %298 = vmatpush.xpose.msra.mxu0 0.0
    %299 = vmatpush.xpose.msra.mxu0 0.0
    %300 = vmatpush.xpose.msra.mxu0 0.0
    %301 = vmatpush.xpose.msra.mxu0 0.0
    %302 = vmatpush.xpose.msra.mxu0 0.0
    %303 = vmatpush.xpose.msra.mxu0 0.0
    %304 = vmatpush.xpose.msra.mxu0 0.0
    %305 = vmatpush.xpose.msra.mxu0 0.0
    %306 = vmatpush.xpose.msra.mxu0 0.0
    %307 = vmatpush.xpose.msra.mxu0 0.0
    %308 = vmatpush.xpose.msra.mxu0 0.0
    %309 = vmatpush.xpose.msra.mxu0 0.0
    %310 = vmatpush.xpose.msra.mxu0 %v293
    %311 = vmatmul.f32.gmra.mxu0 %v290
    %v312 = vpop.f32.mrf.mxu0
    %v313 = vadd.f32 %v261, %v312
    %314 = vdwg.mxu0
    %vm315 = vcmask 64512
    %v316 = vsel %vm315, %v287, -inf
    %317 = vmax.xlane.f32.xlu0 %v316
    %v318 = vpop.xlane.xlu0 %317
    %v319 = vsel %vm315, %v313, -inf
    %320 = vmax.xlane.f32.xlu0 %v319
    %v321 = vpop.xlane.xlu0 %320
    %v322 = vsub.f32 %v287, %v318
    %v323 = vsub.f32 %v313, %v321
    %v324 = vmul.f32 %v322, 1.442695
    %v325 = vpow.pop %v324
    %v326 = vmul.f32 %v323, 1.442695
    %v327 = vpow.pop %v326
    %v328 = vsel %vm315, %v325, 0.0
    %329 = vadd.xlane.f32.xlu0 %v328
    %v330 = vpop.xlane.xlu0 %329
    %v331 = vsel %vm315, %v327, 0.0
    %332 = vadd.xlane.f32.xlu0 %v331
    %v333 = vpop.xlane.xlu0 %332
    %v334 = vrcp.pop %v330
    %v335 = vrcp.pop %v333
    %v336 = vmul.f32 %v325, %v334
    %v337 = vmul.f32 %v327, %v335
    %v339 = vsel %vm315, %v336, 0
    %341 = vmatpush.msra.mxu0 0.0
    %342 = vmatpush.msra.mxu0 0.0
    %343 = vmatpush.msra.mxu0 0.0
    %344 = vmatpush.msra.mxu0 0.0
    %345 = vmatpush.msra.mxu0 0.0
    %346 = vmatpush.msra.mxu0 0.0
    %347 = vmatpush.msra.mxu0 0.0
    %348 = vmatpush.msra.mxu0 0.0
    %349 = vmatpush.msra.mxu0 0.0
    %350 = vmatpush.msra.mxu0 0.0
    %351 = vmatpush.msra.mxu0 0.0
    %352 = vmatpush.msra.mxu0 0.0
    %353 = vmatpush.msra.mxu0 0.0
    %354 = vmatpush.msra.mxu0 0.0
    %355 = vmatpush.msra.mxu0 0.0
    %356 = vmatpush.msra.mxu0 %v252
    %357 = vmatmul.f32.gmra.mxu0 %v339
    %v358 = vpop.f32.mrf.mxu0
    %v359 = vadd.f32 0.0, %v358
    %360 = vdwg.mxu0
    %v362 = vsel %vm315, %v337, 0
    %364 = vmatpush.msra.mxu0 0.0
    %365 = vmatpush.msra.mxu0 0.0
    %366 = vmatpush.msra.mxu0 0.0
    %367 = vmatpush.msra.mxu0 0.0
    %368 = vmatpush.msra.mxu0 0.0
    %369 = vmatpush.msra.mxu0 0.0
    %370 = vmatpush.msra.mxu0 0.0
    %371 = vmatpush.msra.mxu0 0.0
    %372 = vmatpush.msra.mxu0 0.0
    %373 = vmatpush.msra.mxu0 0.0
    %374 = vmatpush.msra.mxu0 0.0
    %375 = vmatpush.msra.mxu0 0.0
    %376 = vmatpush.msra.mxu0 0.0
    %377 = vmatpush.msra.mxu0 0.0
    %378 = vmatpush.msra.mxu0 0.0
    %379 = vmatpush.msra.mxu0 %v254
    %380 = vmatmul.f32.gmra.mxu0 %v362
    %v381 = vpop.f32.mrf.mxu0
    %v382 = vadd.f32 0.0, %v381
    %383 = vdwg.mxu0
    %384 = vst.msk [vmem:[#allocation2] sm:$0xff] %vm262, %v359
    %385 = vst.msk [vmem:[#allocation2 + $0x8] sm:$0xff] %vm262, %v382
    %386 = vrot.lane.b32.xlu0 %v224, 96
    %v387 = vpop.permute.xlu0 %386
    %388 = vrot.lane.b32.xlu0 %v238, 96
    %v389 = vpop.permute.xlu0 %388
    %v390 = vsel %vm262, %v387, 0
    %v392 = vsel %vm262, %v389, 0
    %394 = vmatpush.xpose.msra.mxu0 0.0
    %395 = vmatpush.xpose.msra.mxu0 0.0
    %396 = vmatpush.xpose.msra.mxu0 0.0
    %397 = vmatpush.xpose.msra.mxu0 0.0
    %398 = vmatpush.xpose.msra.mxu0 0.0
    %399 = vmatpush.xpose.msra.mxu0 0.0
    %400 = vmatpush.xpose.msra.mxu0 0.0
    %401 = vmatpush.xpose.msra.mxu0 0.0
    %402 = vmatpush.xpose.msra.mxu0 0.0
    %403 = vmatpush.xpose.msra.mxu0 0.0
    %404 = vmatpush.xpose.msra.mxu0 0.0
    %405 = vmatpush.xpose.msra.mxu0 0.0
    %406 = vmatpush.xpose.msra.mxu0 0.0
    %407 = vmatpush.xpose.msra.mxu0 0.0
    %408 = vmatpush.xpose.msra.mxu0 0.0
    %409 = vmatpush.xpose.msra.mxu0 %v392
    %410 = vmatmul.f32.gmra.mxu0 %v390
    %v411 = vpop.f32.mrf.mxu0
    %v412 = vadd.f32 %v261, %v411
    %413 = vdwg.mxu0
    %414 = vrot.lane.b32.xlu0 %v226, 96
    %v415 = vpop.permute.xlu0 %414
    %416 = vrot.lane.b32.xlu0 %v240, 96
    %v417 = vpop.permute.xlu0 %416
    %v418 = vsel %vm262, %v415, 0
    %v420 = vsel %vm262, %v417, 0
    %422 = vmatpush.xpose.msra.mxu0 0.0
    %423 = vmatpush.xpose.msra.mxu0 0.0
    %424 = vmatpush.xpose.msra.mxu0 0.0
    %425 = vmatpush.xpose.msra.mxu0 0.0
    %426 = vmatpush.xpose.msra.mxu0 0.0
    %427 = vmatpush.xpose.msra.mxu0 0.0
    %428 = vmatpush.xpose.msra.mxu0 0.0
    %429 = vmatpush.xpose.msra.mxu0 0.0
    %430 = vmatpush.xpose.msra.mxu0 0.0
    %431 = vmatpush.xpose.msra.mxu0 0.0
    %432 = vmatpush.xpose.msra.mxu0 0.0
    %433 = vmatpush.xpose.msra.mxu0 0.0
    %434 = vmatpush.xpose.msra.mxu0 0.0
    %435 = vmatpush.xpose.msra.mxu0 0.0
    %436 = vmatpush.xpose.msra.mxu0 0.0
    %437 = vmatpush.xpose.msra.mxu0 %v420
    %438 = vmatmul.f32.gmra.mxu0 %v418
    %v439 = vpop.f32.mrf.mxu0
    %v440 = vadd.f32 %v261, %v439
    %441 = vdwg.mxu0
    %v442 = vsel %vm315, %v412, -inf
    %443 = vmax.xlane.f32.xlu0 %v442
    %v444 = vpop.xlane.xlu0 %443
    %v445 = vsel %vm315, %v440, -inf
    %446 = vmax.xlane.f32.xlu0 %v445
    %v447 = vpop.xlane.xlu0 %446
    %v448 = vsub.f32 %v412, %v444
    %v449 = vsub.f32 %v440, %v447
    %v450 = vmul.f32 %v448, 1.442695
    %v451 = vpow.pop %v450
    %v452 = vmul.f32 %v449, 1.442695
    %v453 = vpow.pop %v452
    %v454 = vsel %vm315, %v451, 0.0
    %455 = vadd.xlane.f32.xlu0 %v454
    %v456 = vpop.xlane.xlu0 %455
    %v457 = vsel %vm315, %v453, 0.0
    %458 = vadd.xlane.f32.xlu0 %v457
    %v459 = vpop.xlane.xlu0 %458
    %v460 = vrcp.pop %v456
    %v461 = vrcp.pop %v459
    %v462 = vmul.f32 %v451, %v460
    %v463 = vmul.f32 %v453, %v461
    %465 = vrot.lane.b32.xlu0 %v252, 96
    %v466 = vpop.permute.xlu0 %465
    %v469 = vsel %vm315, %v462, 0
    %471 = vmatpush.msra.mxu0 0.0
    %472 = vmatpush.msra.mxu0 0.0
    %473 = vmatpush.msra.mxu0 0.0
    %474 = vmatpush.msra.mxu0 0.0
    %475 = vmatpush.msra.mxu0 0.0
    %476 = vmatpush.msra.mxu0 0.0
    %477 = vmatpush.msra.mxu0 0.0
    %478 = vmatpush.msra.mxu0 0.0
    %479 = vmatpush.msra.mxu0 0.0
    %480 = vmatpush.msra.mxu0 0.0
    %481 = vmatpush.msra.mxu0 0.0
    %482 = vmatpush.msra.mxu0 0.0
    %483 = vmatpush.msra.mxu0 0.0
    %484 = vmatpush.msra.mxu0 0.0
    %485 = vmatpush.msra.mxu0 0.0
    %486 = vmatpush.msra.mxu0 %v466
    %487 = vmatmul.f32.gmra.mxu0 %v469
    %v488 = vpop.f32.mrf.mxu0
    %v489 = vadd.f32 0.0, %v488
    %490 = vdwg.mxu0
    %492 = vrot.lane.b32.xlu0 %v254, 96
    %v493 = vpop.permute.xlu0 %492
    %v496 = vsel %vm315, %v463, 0
    %498 = vmatpush.msra.mxu0 0.0
    %499 = vmatpush.msra.mxu0 0.0
    %500 = vmatpush.msra.mxu0 0.0
    %501 = vmatpush.msra.mxu0 0.0
    %502 = vmatpush.msra.mxu0 0.0
    %503 = vmatpush.msra.mxu0 0.0
    %504 = vmatpush.msra.mxu0 0.0
    %505 = vmatpush.msra.mxu0 0.0
    %506 = vmatpush.msra.mxu0 0.0
    %507 = vmatpush.msra.mxu0 0.0
    %508 = vmatpush.msra.mxu0 0.0
    %509 = vmatpush.msra.mxu0 0.0
    %510 = vmatpush.msra.mxu0 0.0
    %511 = vmatpush.msra.mxu0 0.0
    %512 = vmatpush.msra.mxu0 0.0
    %513 = vmatpush.msra.mxu0 %v493
    %514 = vmatmul.f32.gmra.mxu0 %v496
    %v515 = vpop.f32.mrf.mxu0
    %v516 = vadd.f32 0.0, %v515
    %517 = vdwg.mxu0
    %520 = vrot.lane.b32.xlu0 %v489, 32
    %v521 = vpop.permute.xlu0 %520
    %522 = vrot.lane.b32.xlu0 %v516, 32
    %v523 = vpop.permute.xlu0 %522
    %vm526 = vcmask 523520
    %527 = vst.msk [vmem:[#allocation2] sm:$0xff] %vm526, %v521
    %528 = vst.msk [vmem:[#allocation2 + $0x8] sm:$0xff] %vm526, %v523
    %529 = vrot.lane.b32.xlu0 %v224, 64
    %v530 = vpop.permute.xlu0 %529
    %531 = vrot.lane.b32.xlu0 %v238, 64
    %v532 = vpop.permute.xlu0 %531
    %v533 = vsel %vm262, %v530, 0
    %v535 = vsel %vm262, %v532, 0
    %537 = vmatpush.xpose.msra.mxu0 0.0
    %538 = vmatpush.xpose.msra.mxu0 0.0
    %539 = vmatpush.xpose.msra.mxu0 0.0
    %540 = vmatpush.xpose.msra.mxu0 0.0
    %541 = vmatpush.xpose.msra.mxu0 0.0
    %542 = vmatpush.xpose.msra.mxu0 0.0
    %543 = vmatpush.xpose.msra.mxu0 0.0
    %544 = vmatpush.xpose.msra.mxu0 0.0
    %545 = vmatpush.xpose.msra.mxu0 0.0
    %546 = vmatpush.xpose.msra.mxu0 0.0
    %547 = vmatpush.xpose.msra.mxu0 0.0
    %548 = vmatpush.xpose.msra.mxu0 0.0
    %549 = vmatpush.xpose.msra.mxu0 0.0
    %550 = vmatpush.xpose.msra.mxu0 0.0
    %551 = vmatpush.xpose.msra.mxu0 0.0
    %552 = vmatpush.xpose.msra.mxu0 %v535
    %553 = vmatmul.f32.gmra.mxu0 %v533
    %v554 = vpop.f32.mrf.mxu0
    %v555 = vadd.f32 %v261, %v554
    %556 = vdwg.mxu0
    %557 = vrot.lane.b32.xlu0 %v226, 64
    %v558 = vpop.permute.xlu0 %557
    %559 = vrot.lane.b32.xlu0 %v240, 64
    %v560 = vpop.permute.xlu0 %559
    %v561 = vsel %vm262, %v558, 0
    %v563 = vsel %vm262, %v560, 0
    %565 = vmatpush.xpose.msra.mxu0 0.0
    %566 = vmatpush.xpose.msra.mxu0 0.0
    %567 = vmatpush.xpose.msra.mxu0 0.0
    %568 = vmatpush.xpose.msra.mxu0 0.0
    %569 = vmatpush.xpose.msra.mxu0 0.0
    %570 = vmatpush.xpose.msra.mxu0 0.0
    %571 = vmatpush.xpose.msra.mxu0 0.0
    %572 = vmatpush.xpose.msra.mxu0 0.0
    %573 = vmatpush.xpose.msra.mxu0 0.0
    %574 = vmatpush.xpose.msra.mxu0 0.0
    %575 = vmatpush.xpose.msra.mxu0 0.0
    %576 = vmatpush.xpose.msra.mxu0 0.0
    %577 = vmatpush.xpose.msra.mxu0 0.0
    %578 = vmatpush.xpose.msra.mxu0 0.0
    %579 = vmatpush.xpose.msra.mxu0 0.0
    %580 = vmatpush.xpose.msra.mxu0 %v563
    %581 = vmatmul.f32.gmra.mxu0 %v561
    %v582 = vpop.f32.mrf.mxu0
    %v583 = vadd.f32 %v261, %v582
    %584 = vdwg.mxu0
    %v585 = vsel %vm315, %v555, -inf
    %586 = vmax.xlane.f32.xlu0 %v585
    %v587 = vpop.xlane.xlu0 %586
    %v588 = vsel %vm315, %v583, -inf
    %589 = vmax.xlane.f32.xlu0 %v588
    %v590 = vpop.xlane.xlu0 %589
    %v591 = vsub.f32 %v555, %v587
    %v592 = vsub.f32 %v583, %v590
    %v593 = vmul.f32 %v591, 1.442695
    %v594 = vpow.pop %v593
    %v595 = vmul.f32 %v592, 1.442695
    %v596 = vpow.pop %v595
    %v597 = vsel %vm315, %v594, 0.0
    %598 = vadd.xlane.f32.xlu0 %v597
    %v599 = vpop.xlane.xlu0 %598
    %v600 = vsel %vm315, %v596, 0.0
    %601 = vadd.xlane.f32.xlu0 %v600
    %v602 = vpop.xlane.xlu0 %601
    %v603 = vrcp.pop %v599
    %v604 = vrcp.pop %v602
    %v605 = vmul.f32 %v594, %v603
    %v606 = vmul.f32 %v596, %v604
    %607 = vrot.lane.b32.xlu0 %v252, 64
    %v608 = vpop.permute.xlu0 %607
    %v611 = vsel %vm315, %v605, 0
    %613 = vmatpush.msra.mxu0 0.0
    %614 = vmatpush.msra.mxu0 0.0
    %615 = vmatpush.msra.mxu0 0.0
    %616 = vmatpush.msra.mxu0 0.0
    %617 = vmatpush.msra.mxu0 0.0
    %618 = vmatpush.msra.mxu0 0.0
    %619 = vmatpush.msra.mxu0 0.0
    %620 = vmatpush.msra.mxu0 0.0
    %621 = vmatpush.msra.mxu0 0.0
    %622 = vmatpush.msra.mxu0 0.0
    %623 = vmatpush.msra.mxu0 0.0
    %624 = vmatpush.msra.mxu0 0.0
    %625 = vmatpush.msra.mxu0 0.0
    %626 = vmatpush.msra.mxu0 0.0
    %627 = vmatpush.msra.mxu0 0.0
    %628 = vmatpush.msra.mxu0 %v608
    %629 = vmatmul.f32.gmra.mxu0 %v611
    %v630 = vpop.f32.mrf.mxu0
    %v631 = vadd.f32 0.0, %v630
    %632 = vdwg.mxu0
    %633 = vrot.lane.b32.xlu0 %v254, 64
    %v634 = vpop.permute.xlu0 %633
    %v637 = vsel %vm315, %v606, 0
    %639 = vmatpush.msra.mxu0 0.0
    %640 = vmatpush.msra.mxu0 0.0
    %641 = vmatpush.msra.mxu0 0.0
    %642 = vmatpush.msra.mxu0 0.0
    %643 = vmatpush.msra.mxu0 0.0
    %644 = vmatpush.msra.mxu0 0.0
    %645 = vmatpush.msra.mxu0 0.0
    %646 = vmatpush.msra.mxu0 0.0
    %647 = vmatpush.msra.mxu0 0.0
    %648 = vmatpush.msra.mxu0 0.0
    %649 = vmatpush.msra.mxu0 0.0
    %650 = vmatpush.msra.mxu0 0.0
    %651 = vmatpush.msra.mxu0 0.0
    %652 = vmatpush.msra.mxu0 0.0
    %653 = vmatpush.msra.mxu0 0.0
    %654 = vmatpush.msra.mxu0 %v634
    %655 = vmatmul.f32.gmra.mxu0 %v637
    %v656 = vpop.f32.mrf.mxu0
    %v657 = vadd.f32 0.0, %v656
    %658 = vdwg.mxu0
    %661 = vrot.lane.b32.xlu0 %v631, 64
    %v662 = vpop.permute.xlu0 %661
    %663 = vrot.lane.b32.xlu0 %v657, 64
    %v664 = vpop.permute.xlu0 %663
    %vm667 = vcmask 785920
    %668 = vst.msk [vmem:[#allocation2] sm:$0xff] %vm667, %v662
    %669 = vst.msk [vmem:[#allocation2 + $0x8] sm:$0xff] %vm667, %v664
    %670 = vrot.lane.b32.xlu0 %v224, 32
    %v671 = vpop.permute.xlu0 %670
    %672 = vrot.lane.b32.xlu0 %v238, 32
    %v673 = vpop.permute.xlu0 %672
    %v674 = vsel %vm262, %v671, 0
    %v676 = vsel %vm262, %v673, 0
    %678 = vmatpush.xpose.msra.mxu0 0.0
    %679 = vmatpush.xpose.msra.mxu0 0.0
    %680 = vmatpush.xpose.msra.mxu0 0.0
    %681 = vmatpush.xpose.msra.mxu0 0.0
    %682 = vmatpush.xpose.msra.mxu0 0.0
    %683 = vmatpush.xpose.msra.mxu0 0.0
    %684 = vmatpush.xpose.msra.mxu0 0.0
    %685 = vmatpush.xpose.msra.mxu0 0.0
    %686 = vmatpush.xpose.msra.mxu0 0.0
    %687 = vmatpush.xpose.msra.mxu0 0.0
    %688 = vmatpush.xpose.msra.mxu0 0.0
    %689 = vmatpush.xpose.msra.mxu0 0.0
    %690 = vmatpush.xpose.msra.mxu0 0.0
    %691 = vmatpush.xpose.msra.mxu0 0.0
    %692 = vmatpush.xpose.msra.mxu0 0.0
    %693 = vmatpush.xpose.msra.mxu0 %v676
    %694 = vmatmul.f32.gmra.mxu0 %v674
    %v695 = vpop.f32.mrf.mxu0
    %v696 = vadd.f32 %v261, %v695
    %697 = vdwg.mxu0
    %698 = vrot.lane.b32.xlu0 %v226, 32
    %v699 = vpop.permute.xlu0 %698
    %700 = vrot.lane.b32.xlu0 %v240, 32
    %v701 = vpop.permute.xlu0 %700
    %v702 = vsel %vm262, %v699, 0
    %v704 = vsel %vm262, %v701, 0
    %706 = vmatpush.xpose.msra.mxu0 0.0
    %707 = vmatpush.xpose.msra.mxu0 0.0
    %708 = vmatpush.xpose.msra.mxu0 0.0
    %709 = vmatpush.xpose.msra.mxu0 0.0
    %710 = vmatpush.xpose.msra.mxu0 0.0
    %711 = vmatpush.xpose.msra.mxu0 0.0
    %712 = vmatpush.xpose.msra.mxu0 0.0
    %713 = vmatpush.xpose.msra.mxu0 0.0
    %714 = vmatpush.xpose.msra.mxu0 0.0
    %715 = vmatpush.xpose.msra.mxu0 0.0
    %716 = vmatpush.xpose.msra.mxu0 0.0
    %717 = vmatpush.xpose.msra.mxu0 0.0
    %718 = vmatpush.xpose.msra.mxu0 0.0
    %719 = vmatpush.xpose.msra.mxu0 0.0
    %720 = vmatpush.xpose.msra.mxu0 0.0
    %721 = vmatpush.xpose.msra.mxu0 %v704
    %722 = vmatmul.f32.gmra.mxu0 %v702
    %v723 = vpop.f32.mrf.mxu0
    %v724 = vadd.f32 %v261, %v723
    %725 = vdwg.mxu0
    %v726 = vsel %vm315, %v696, -inf
    %727 = vmax.xlane.f32.xlu0 %v726
    %v728 = vpop.xlane.xlu0 %727
    %v729 = vsel %vm315, %v724, -inf
    %730 = vmax.xlane.f32.xlu0 %v729
    %v731 = vpop.xlane.xlu0 %730
    %v732 = vsub.f32 %v696, %v728
    %v733 = vsub.f32 %v724, %v731
    %v734 = vmul.f32 %v732, 1.442695
    %v735 = vpow.pop %v734
    %v736 = vmul.f32 %v733, 1.442695
    %v737 = vpow.pop %v736
    %v738 = vsel %vm315, %v735, 0.0
    %739 = vadd.xlane.f32.xlu0 %v738
    %v740 = vpop.xlane.xlu0 %739
    %v741 = vsel %vm315, %v737, 0.0
    %742 = vadd.xlane.f32.xlu0 %v741
    %v743 = vpop.xlane.xlu0 %742
    %v744 = vrcp.pop %v740
    %v745 = vrcp.pop %v743
    %v746 = vmul.f32 %v735, %v744
    %v747 = vmul.f32 %v737, %v745
    %748 = vrot.lane.b32.xlu0 %v252, 32
    %v749 = vpop.permute.xlu0 %748
    %v752 = vsel %vm315, %v746, 0
    %754 = vmatpush.msra.mxu0 0.0
    %755 = vmatpush.msra.mxu0 0.0
    %756 = vmatpush.msra.mxu0 0.0
    %757 = vmatpush.msra.mxu0 0.0
    %758 = vmatpush.msra.mxu0 0.0
    %759 = vmatpush.msra.mxu0 0.0
    %760 = vmatpush.msra.mxu0 0.0
    %761 = vmatpush.msra.mxu0 0.0
    %762 = vmatpush.msra.mxu0 0.0
    %763 = vmatpush.msra.mxu0 0.0
    %764 = vmatpush.msra.mxu0 0.0
    %765 = vmatpush.msra.mxu0 0.0
    %766 = vmatpush.msra.mxu0 0.0
    %767 = vmatpush.msra.mxu0 0.0
    %768 = vmatpush.msra.mxu0 0.0
    %769 = vmatpush.msra.mxu0 %v749
    %770 = vmatmul.f32.gmra.mxu0 %v752
    %v771 = vpop.f32.mrf.mxu0
    %v772 = vadd.f32 0.0, %v771
    %773 = vdwg.mxu0
    %774 = vrot.lane.b32.xlu0 %v254, 32
    %v775 = vpop.permute.xlu0 %774
    %v778 = vsel %vm315, %v747, 0
    %780 = vmatpush.msra.mxu0 0.0
    %781 = vmatpush.msra.mxu0 0.0
    %782 = vmatpush.msra.mxu0 0.0
    %783 = vmatpush.msra.mxu0 0.0
    %784 = vmatpush.msra.mxu0 0.0
    %785 = vmatpush.msra.mxu0 0.0
    %786 = vmatpush.msra.mxu0 0.0
    %787 = vmatpush.msra.mxu0 0.0
    %788 = vmatpush.msra.mxu0 0.0
    %789 = vmatpush.msra.mxu0 0.0
    %790 = vmatpush.msra.mxu0 0.0
    %791 = vmatpush.msra.mxu0 0.0
    %792 = vmatpush.msra.mxu0 0.0
    %793 = vmatpush.msra.mxu0 0.0
    %794 = vmatpush.msra.mxu0 0.0
    %795 = vmatpush.msra.mxu0 %v775
    %796 = vmatmul.f32.gmra.mxu0 %v778
    %v797 = vpop.f32.mrf.mxu0
    %v798 = vadd.f32 0.0, %v797
    %799 = vdwg.mxu0
    %802 = vrot.lane.b32.xlu0 %v772, 96
    %v803 = vpop.permute.xlu0 %802
    %804 = vrot.lane.b32.xlu0 %v798, 96
    %v805 = vpop.permute.xlu0 %804
    %vm808 = vcmask 1048320
    %809 = vst.msk [vmem:[#allocation2] sm:$0xff] %vm808, %v803
    %810 = vst.msk [vmem:[#allocation2 + $0x8] sm:$0xff] %vm808, %v805
    %v811 = vld [vmem:[#allocation2] sm:$0xff]
    %v812 = vld [vmem:[#allocation2 + $0x8] sm:$0xff]
    %v813 = vadd.f32 %v811, %v43
    %v814 = vadd.f32 %v812, %v44
    %v815 = vld [vmem:[%s8] sm:$0x3]
    %v816 = vadd.f32 %v813, %v814
    %v817 = vrot.slane %v816, 4
    %v818 = vadd.f32 %v816, %v817
    %v819 = vrot.slane %v818, 2
    %v820 = vadd.f32 %v818, %v819
    %v821 = vrot.slane %v820, 1
    %v822 = vadd.f32 %v820, %v821
    %v823 = vmul.f32 %v813, %v813
    %v824 = vmul.f32 %v814, %v814
    %v825 = vadd.f32 %v823, %v824
    %v826 = vrot.slane %v825, 4
    %v827 = vadd.f32 %v825, %v826
    %v828 = vrot.slane %v827, 2
    %v829 = vadd.f32 %v827, %v828
    %v830 = vrot.slane %v829, 1
    %v831 = vadd.f32 %v829, %v830
    %vm832 = vcmask 1040384
    %v833 = vsel %vm832, %v822, %v831
    %v834 = vld [vmem:[%s10] sm:$0xff]
    %v835 = vld [vmem:[%s10 + $0x8] sm:$0xff]
    %v836 = vld [vmem:[%s10 + $0x10] sm:$0xff]
    %v837 = vld [vmem:[%s10 + $0x18] sm:$0xff]
    %v838 = vld [vmem:[%s10 + $0x20] sm:$0xff]
    %v839 = vld [vmem:[%s10 + $0x28] sm:$0xff]
    %v840 = vld [vmem:[%s10 + $0x30] sm:$0xff]
    %v841 = vld [vmem:[%s10 + $0x38] sm:$0xff]
    %v842 = vld [vmem:[%s10 + $0x40] sm:$0xff]
    %v843 = vld [vmem:[%s10 + $0x48] sm:$0xff]
    %v844 = vld [vmem:[%s10 + $0x50] sm:$0xff]
    %v845 = vld [vmem:[%s10 + $0x58] sm:$0xff]
    %v846 = vld [vmem:[%s10 + $0x60] sm:$0xff]
    %v847 = vld [vmem:[%s10 + $0x68] sm:$0xff]
    %v848 = vld [vmem:[%s10 + $0x70] sm:$0xff]
    %v849 = vld [vmem:[%s10 + $0x78] sm:$0xff]
    %850 = vmatpush.msra.mxu0 %v849
    %851 = vmatpush.msra.mxu0 %v848
    %852 = vmatpush.msra.mxu0 %v847
    %853 = vmatpush.msra.mxu0 %v846
    %854 = vmatpush.msra.mxu0 %v845
    %855 = vmatpush.msra.mxu0 %v844
    %856 = vmatpush.msra.mxu0 %v843
    %857 = vmatpush.msra.mxu0 %v842
    %858 = vmatpush.msra.mxu0 %v841
    %859 = vmatpush.msra.mxu0 %v840
    %860 = vmatpush.msra.mxu0 %v839
    %861 = vmatpush.msra.mxu0 %v838
    %862 = vmatpush.msra.mxu0 %v837
    %863 = vmatpush.msra.mxu0 %v836
    %864 = vmatpush.msra.mxu0 %v835
    %865 = vmatpush.msra.mxu0 %v834
    %866 = vmatmul.f32.gmra.mxu0 %v833
    %v867 = vpop.f32.mrf.mxu0
    %v868 = vadd.f32 0.0, %v867
    %869 = vdwg.mxu0
    %v870 = vmul.f32 %v868, 0.001953125
    %v871 = vmul.f32 %v870, %v870
    %v873 = vrot.slane %v871, 7
    %v875 = vsub.f32 %v870, %v873
    %v876 = vadd.f32 %v875, 1e-05
    %v877 = vrsqrt.pop %v876
    %v878 = vmul.f32 %v877, %v876
    %v879 = vmul.f32 %v878, %v877
    %v880 = vmul.f32 0.5, %v879
    %v881 = vsub.f32 1.5, %v880
    %v882 = vmul.f32 %v877, %v881
    %vm883 = vweird.f32 %v876
    %vm884 = vweird.f32 %v877
    %vm885 = vmor %vm883, %vm884
    %v886 = vsel %vm885, %v877, %v882
    %v888 = vrot.slane %v886, 1
    %v890 = vmul.f32 %v815, %v888
    %v891 = vmul.f32 %v870, %v890
    %v893 = vrot.slane %v891, 7
    %v895 = vsub.f32 %v815, %v893
    %v896 = vperm.slane %v890, 0
    %v897 = vmul.f32 %v813, %v896
    %v898 = vmul.f32 %v814, %v896
    %v899 = vperm.slane %v895, 1
    %v900 = vadd.f32 %v897, %v899
    %v901 = vadd.f32 %v898, %v899
    %v902 = vpack.c.bf16 %v901, %v900
    %v903 = vld [vmem:[%s4] sm:$0xf]
    %v904 = vld [vmem:[%s4 + $0x4] sm:$0xf]
    %v905 = vld [vmem:[%s4 + $0x8] sm:$0xf]
    %v906 = vld [vmem:[%s4 + $0xc] sm:$0xf]
    %v907 = vld [vmem:[%s4 + $0x10] sm:$0xf]
    %v908 = vld [vmem:[%s4 + $0x14] sm:$0xf]
    %v909 = vld [vmem:[%s4 + $0x18] sm:$0xf]
    %v910 = vld [vmem:[%s4 + $0x1c] sm:$0xf]
    %v911 = vld [vmem:[%s4 + $0x20] sm:$0xf]
    %v912 = vld [vmem:[%s4 + $0x24] sm:$0xf]
    %v913 = vld [vmem:[%s4 + $0x28] sm:$0xf]
    %v914 = vld [vmem:[%s4 + $0x2c] sm:$0xf]
    %v915 = vld [vmem:[%s4 + $0x30] sm:$0xf]
    %v916 = vld [vmem:[%s4 + $0x34] sm:$0xf]
    %v917 = vld [vmem:[%s4 + $0x38] sm:$0xf]
    %v918 = vld [vmem:[%s4 + $0x3c] sm:$0xf]
    %v919 = vld [vmem:[%s5] sm:$0x1]
    %v921 = vperm.slane %v919, 0
    %v939 = vunpack.c.l.b16 %v903
    %v940 = vunpack.c.l.b16 %v904
    %v941 = vunpack.c.l.b16 %v905
    %v942 = vunpack.c.l.b16 %v906
    %v943 = vunpack.c.l.b16 %v907
    %v944 = vunpack.c.l.b16 %v908
    %v945 = vunpack.c.l.b16 %v909
    %v946 = vunpack.c.l.b16 %v910
    %v947 = vunpack.c.l.b16 %v911
    %v948 = vunpack.c.l.b16 %v912
    %v949 = vunpack.c.l.b16 %v913
    %v950 = vunpack.c.l.b16 %v914
    %v951 = vunpack.c.l.b16 %v915
    %v952 = vunpack.c.l.b16 %v916
    %v953 = vunpack.c.l.b16 %v917
    %v954 = vunpack.c.l.b16 %v918
    %v955 = vpack.c.b16 %v940, %v939
    %v956 = vpack.c.b16 %v942, %v941
    %v957 = vpack.c.b16 %v944, %v943
    %v958 = vpack.c.b16 %v946, %v945
    %v959 = vpack.c.b16 %v948, %v947
    %v960 = vpack.c.b16 %v950, %v949
    %v961 = vpack.c.b16 %v952, %v951
    %v962 = vpack.c.b16 %v954, %v953
    %971 = vmatpush.bf16.msra.mxu0 %v962
    %972 = vmatpush.bf16.msra.mxu0 %v961
    %973 = vmatpush.bf16.msra.mxu0 %v960
    %974 = vmatpush.bf16.msra.mxu0 %v959
    %975 = vmatpush.bf16.msra.mxu0 %v958
    %976 = vmatpush.bf16.msra.mxu0 %v957
    %977 = vmatpush.bf16.msra.mxu0 %v956
    %978 = vmatpush.bf16.msra.mxu0 %v955
    %979 = vmatmul.bf16.gmra.mxu0 %v902
    %v980 = vpop.f32.mrf.mxu0
    %v981 = vadd.f32 %v921, %v980
    %v982 = vpop.f32.mrf.mxu0
    %v983 = vadd.f32 %v921, %v982
    %984 = vdwg.mxu0
    %v985 = vmax.f32 %v981, 0.0
    %v986 = vmax.f32 %v983, 0.0
    %v987 = vadd.f32 %v985, %v900
    %v988 = vadd.f32 %v986, %v901
    %v989 = vld [vmem:[%s9] sm:$0x3]
    %v990 = vadd.f32 %v987, %v988
    %v991 = vrot.slane %v990, 4
    %v992 = vadd.f32 %v990, %v991
    %v993 = vrot.slane %v992, 2
    %v994 = vadd.f32 %v992, %v993
    %v995 = vrot.slane %v994, 1
    %v996 = vadd.f32 %v994, %v995
    %v997 = vmul.f32 %v987, %v987
    %v998 = vmul.f32 %v988, %v988
    %v999 = vadd.f32 %v997, %v998
    %v1000 = vrot.slane %v999, 4
    %v1001 = vadd.f32 %v999, %v1000
    %v1002 = vrot.slane %v1001, 2
    %v1003 = vadd.f32 %v1001, %v1002
    %v1004 = vrot.slane %v1003, 1
    %v1005 = vadd.f32 %v1003, %v1004
    %v1006 = vsel %vm832, %v996, %v1005
    %1007 = vmatpush.msra.mxu0 %v849
    %1008 = vmatpush.msra.mxu0 %v848
    %1009 = vmatpush.msra.mxu0 %v847
    %1010 = vmatpush.msra.mxu0 %v846
    %1011 = vmatpush.msra.mxu0 %v845
    %1012 = vmatpush.msra.mxu0 %v844
    %1013 = vmatpush.msra.mxu0 %v843
    %1014 = vmatpush.msra.mxu0 %v842
    %1015 = vmatpush.msra.mxu0 %v841
    %1016 = vmatpush.msra.mxu0 %v840
    %1017 = vmatpush.msra.mxu0 %v839
    %1018 = vmatpush.msra.mxu0 %v838
    %1019 = vmatpush.msra.mxu0 %v837
    %1020 = vmatpush.msra.mxu0 %v836
    %1021 = vmatpush.msra.mxu0 %v835
    %1022 = vmatpush.msra.mxu0 %v834
    %1023 = vmatmul.f32.gmra.mxu0 %v1006
    %v1024 = vpop.f32.mrf.mxu0
    %v1025 = vadd.f32 0.0, %v1024
    %1026 = vdwg.mxu0
    %v1027 = vmul.f32 %v1025, 0.001953125
    %v1028 = vmul.f32 %v1027, %v1027
    %v1030 = vrot.slane %v1028, 7
    %v1032 = vsub.f32 %v1027, %v1030
    %v1033 = vadd.f32 %v1032, 1e-05
    %v1034 = vrsqrt.pop %v1033
    %v1035 = vmul.f32 %v1034, %v1033
    %v1036 = vmul.f32 %v1035, %v1034
    %v1037 = vmul.f32 0.5, %v1036
    %v1038 = vsub.f32 1.5, %v1037
    %v1039 = vmul.f32 %v1034, %v1038
    %vm1040 = vweird.f32 %v1033
    %vm1041 = vweird.f32 %v1034
    %vm1042 = vmor %vm1040, %vm1041
    %v1043 = vsel %vm1042, %v1034, %v1039
    %v1045 = vrot.slane %v1043, 1
    %v1047 = vmul.f32 %v989, %v1045
    %v1048 = vmul.f32 %v1027, %v1047
    %v1050 = vrot.slane %v1048, 7
    %v1052 = vsub.f32 %v989, %v1050
    %v1053 = vperm.slane %v1047, 0
    %v1054 = vmul.f32 %v987, %v1053
    %v1055 = vmul.f32 %v988, %v1053
    %v1056 = vperm.slane %v1052, 1
    %v1057 = vadd.f32 %v1054, %v1056
    %v1058 = vadd.f32 %v1055, %v1056
    %v1059 = vpack.c.bf16 %v1058, %v1057
    %v1060 = vld [vmem:[%s6] sm:$0xf]
    %v1061 = vld [vmem:[%s6 + $0x4] sm:$0xf]
    %v1062 = vld [vmem:[%s6 + $0x8] sm:$0xf]
    %v1063 = vld [vmem:[%s6 + $0xc] sm:$0xf]
    %v1064 = vld [vmem:[%s6 + $0x10] sm:$0xf]
    %v1065 = vld [vmem:[%s6 + $0x14] sm:$0xf]
    %v1066 = vld [vmem:[%s6 + $0x18] sm:$0xf]
    %v1067 = vld [vmem:[%s6 + $0x1c] sm:$0xf]
    %v1068 = vld [vmem:[%s6 + $0x20] sm:$0xf]
    %v1069 = vld [vmem:[%s6 + $0x24] sm:$0xf]
    %v1070 = vld [vmem:[%s6 + $0x28] sm:$0xf]
    %v1071 = vld [vmem:[%s6 + $0x2c] sm:$0xf]
    %v1072 = vld [vmem:[%s6 + $0x30] sm:$0xf]
    %v1073 = vld [vmem:[%s6 + $0x34] sm:$0xf]
    %v1074 = vld [vmem:[%s6 + $0x38] sm:$0xf]
    %v1075 = vld [vmem:[%s6 + $0x3c] sm:$0xf]
    %v1076 = vld [vmem:[%s7] sm:$0x1]
    %v1078 = vperm.slane %v1076, 0
    %v1096 = vunpack.c.l.b16 %v1060
    %v1097 = vunpack.c.l.b16 %v1061
    %v1098 = vunpack.c.l.b16 %v1062
    %v1099 = vunpack.c.l.b16 %v1063
    %v1100 = vunpack.c.l.b16 %v1064
    %v1101 = vunpack.c.l.b16 %v1065
    %v1102 = vunpack.c.l.b16 %v1066
    %v1103 = vunpack.c.l.b16 %v1067
    %v1104 = vunpack.c.l.b16 %v1068
    %v1105 = vunpack.c.l.b16 %v1069
    %v1106 = vunpack.c.l.b16 %v1070
    %v1107 = vunpack.c.l.b16 %v1071
    %v1108 = vunpack.c.l.b16 %v1072
    %v1109 = vunpack.c.l.b16 %v1073
    %v1110 = vunpack.c.l.b16 %v1074
    %v1111 = vunpack.c.l.b16 %v1075
    %v1112 = vpack.c.b16 %v1097, %v1096
    %v1113 = vpack.c.b16 %v1099, %v1098
    %v1114 = vpack.c.b16 %v1101, %v1100
    %v1115 = vpack.c.b16 %v1103, %v1102
    %v1116 = vpack.c.b16 %v1105, %v1104
    %v1117 = vpack.c.b16 %v1107, %v1106
    %v1118 = vpack.c.b16 %v1109, %v1108
    %v1119 = vpack.c.b16 %v1111, %v1110
    %1128 = vmatpush.bf16.msra.mxu0 %v1119
    %1129 = vmatpush.bf16.msra.mxu0 %v1118
    %1130 = vmatpush.bf16.msra.mxu0 %v1117
    %1131 = vmatpush.bf16.msra.mxu0 %v1116
    %1132 = vmatpush.bf16.msra.mxu0 %v1115
    %1133 = vmatpush.bf16.msra.mxu0 %v1114
    %1134 = vmatpush.bf16.msra.mxu0 %v1113
    %1135 = vmatpush.bf16.msra.mxu0 %v1112
    %1136 = vmatmul.bf16.gmra.mxu0 %v1059
    %v1137 = vpop.f32.mrf.mxu0
    %v1138 = vadd.f32 %v1078, %v1137
    %v1139 = vpop.f32.mrf.mxu0
    %v1140 = vadd.f32 %v1078, %v1139
    %1141 = vdwg.mxu0
    %1142 = vst [vmem:[#allocation3] sm:$0xff] %v1138
    %1143 = vst [vmem:[#allocation3 + $0x8] sm:$0xff] %v1140
    // Predicated region
    $region46: #{model_forward.1} parent=1 // pred_check
      _
    $region47: #{model_forward.1} parent=1 // pred_check_branch
      %1145 = sbr.rel (0) target = $region49
    $region48: #{model_forward.1} parent=1 // pred_region
      %1147 = vsyncadd [#allocation4], 0
      %s1148 = sshll.u32 [#allocation3], 4
      %s1149 = int_to_ptr.vmem [resolvable:$true] %s1148
      %s1150 = sshll.u32 %s11, 4
      %s1151 = int_to_ptr.hbm [resolvable:$true] %s1150
      %1156 = dma.vmem_to_hbm [thread:$0]  %s1149, 256, %s1151, [#allocation4], 128, 128, 8
    $region49: #{model_forward.1} parent=1 // pred_fallthru
      _
    // Predicated region
    $region50: #{model_forward.1} parent=1 // pred_check
      _
    $region51: #{model_forward.1} parent=1 // pred_check_branch
      %1158 = sbr.rel (0) target = $region53
    $region52: #{model_forward.1} parent=1 // pred_region
      %1160 = dma.done [#allocation4], 256
    $region53: #{model_forward.1} parent=1 // pred_fallthru
      _
    %1161 = vsyncpa [#allocation4], 1

</llo_original>
